<compile_context>
chip_gen: v7x
topology: tpu7x:2x2x1
jax: 0.10.0
libtpu: 0.0.40
codegen_flags: <defaults>
</compile_context>

<pallas_src>
import math
from functools import partial

import jax
import jax.numpy as jnp
from jax.experimental import pallas as pl
from jax.experimental.pallas import tpu as pltpu


# ------------------------------- in-kernel helpers -------------------------------
def _layernorm(x, w, b, eps):
    mu = jnp.mean(x, axis=-1, keepdims=True)
    var = jnp.mean((x - mu) ** 2, axis=-1, keepdims=True)
    xhat = (x - mu) * jax.lax.rsqrt(var + eps)
    return xhat * w + b


def _gelu_tanh(x):
    c = math.sqrt(2.0 / math.pi)
    return 0.5 * x * (1.0 + jnp.tanh(c * (x + 0.044715 * x * x * x)))


# --------------------------------- Pallas kernel ---------------------------------
def disc_transformer_kernel(
    hs_q_ref, hs_kv_ref,
    shift1_ref, scale1_ref, gate1_ref,
    shift2_ref, scale2_ref, gate2_ref,
    n1_g_ref, n1_b_ref,
    wq_ref, wk_ref, wv_ref,
    qn_g_ref, qn_b_ref, kn_g_ref, kn_b_ref,
    wo_ref, bo_ref,
    n2_g_ref, n2_b_ref,
    ff1_w_ref, ff1_b_ref, ff2_w_ref, ff2_b_ref,
    out_ref,
    *, num_heads, head_dim, eps, qk_eps):
    f32 = jnp.float32
    bf = jnp.bfloat16

    hs = hs_q_ref[0]        # [tS, D]  residual / query tile (f32)
    hs_kv = hs_kv_ref[0]    # [S,  D]  full sequence for K/V (f32)

    # Conditioning (precomputed in the wrapper), per-batch vectors.
    shift1, scale1, gate1 = shift1_ref[0], scale1_ref[0], gate1_ref[0]   # [1, D]
    shift2, scale2, gate2 = shift2_ref[0], scale2_ref[0], gate2_ref[0]   # [1, D]

    n1_g, n1_b = n1_g_ref[...], n1_b_ref[...]

    # ---- adaLN (LayerNormZero #1) --------------------------------------------------
    norm_q = _layernorm(hs, n1_g, n1_b, eps) * (1.0 + scale1) + shift1       # [tS, D]
    norm_kv = _layernorm(hs_kv, n1_g, n1_b, eps) * (1.0 + scale1) + shift1   # [S,  D]

    # ---- q/k/v projections: bf16 on MXU, f32 accumulate ----------------------------
    q = jnp.dot(norm_q.astype(bf), wq_ref[...], preferred_element_type=f32)   # [tS, D]
    k = jnp.dot(norm_kv.astype(bf), wk_ref[...], preferred_element_type=f32)  # [S,  D]
    v = jnp.dot(norm_kv.astype(bf), wv_ref[...], preferred_element_type=f32)  # [S,  D]

    # ---- head-batched attention: [H, seq, head_dim], leading batch dim on the MXU --
    def to_heads(x):  # [seq, D] -> [H, seq, head_dim]
        return jnp.stack(
            [x[:, h * head_dim:(h + 1) * head_dim] for h in range(num_heads)], axis=0)

    # qk layer-norm applied once in the head-batched layout (gamma/beta broadcast once)
    qh = _layernorm(to_heads(q), qn_g_ref[...], qn_b_ref[...], qk_eps)        # [H, tS, hd]
    kh = _layernorm(to_heads(k), kn_g_ref[...], kn_b_ref[...], qk_eps)        # [H, S,  hd]
    vh = to_heads(v)                                                          # [H, S,  hd]

    sm_scale = 1.0 / math.sqrt(head_dim)
    s = jnp.einsum('hqd,hkd->hqk', qh.astype(bf), kh.astype(bf),
                   preferred_element_type=f32) * sm_scale                     # [H, tS, S]
    s = s - jnp.max(s, axis=-1, keepdims=True)
    e = jnp.exp(s)
    p_attn = e * pl.reciprocal(jnp.sum(e, axis=-1, keepdims=True), approx=True)
    o = jnp.einsum('hqk,hkd->hqd', p_attn.astype(bf), vh.astype(bf),
                   preferred_element_type=f32)                                # [H, tS, hd]

    attn = jnp.concatenate([o[h] for h in range(num_heads)], axis=-1)         # [tS, D]
    attn = jnp.dot(attn.astype(bf), wo_ref[...], preferred_element_type=f32) + bo_ref[...]

    hs = hs + gate1 * attn

    # ---- adaLN (LayerNormZero #2) + FeedForward -------------------------------------
    norm2 = _layernorm(hs, n2_g_ref[...], n2_b_ref[...], eps) * (1.0 + scale2) + shift2
    h1 = jnp.dot(norm2.astype(bf), ff1_w_ref[...], preferred_element_type=f32) + ff1_b_ref[...]
    h1 = _gelu_tanh(h1)
    ff = jnp.dot(h1.astype(bf), ff2_w_ref[...], preferred_element_type=f32) + ff2_b_ref[...]

    out_ref[0] = hs + gate2 * ff


# ----------------------------------- wrapper --------------------------------------
def _pick_seq_tile(S, max_tile=256):
    if S <= max_tile:
        return S
    for cand in (512, 384, 256, 128, 64, 32, 16, 8):
        if cand <= max_tile and S % cand == 0:
            return cand
    return S  # fallback: no clean divisor, keep full sequence resident


def disc_transformer(hs, temb, p, *, num_heads, head_dim, eps=1e-5, qk_eps=1e-6,
                     seq_tile=256):
    B, S, D = hs.shape
    assert D == num_heads * head_dim
    inner = p["ff1_w"].shape[1]

    # ---- conditioning hoisted out of the kernel (tiny, MXU-hostile matmuls) --------
    t_act = jax.nn.silu(temb.astype(jnp.float32))                 # [B, T]
    cond1 = t_act @ p["ln1_w"] + p["ln1_b"]                       # [B, 3D]
    cond2 = t_act @ p["ln2_w"] + p["ln2_b"]
    shift1, scale1, gate1 = jnp.split(cond1, 3, axis=-1)
    shift2, scale2, gate2 = jnp.split(cond2, 3, axis=-1)
    conds = [c.reshape(B, 1, D).astype(jnp.float32)
             for c in (shift1, scale1, gate1, shift2, scale2, gate2)]

    # ---- bf16 weights for the MXU (f32 accumulation in-kernel) ---------------------
    bf = jnp.bfloat16
    wq, wk, wv, wo = (p[k].astype(bf) for k in ("wq", "wk", "wv", "wo"))
    ff1_w, ff2_w = p["ff1_w"].astype(bf), p["ff2_w"].astype(bf)

    # ---- sequence tiling ------------------------------------------------------------
    tS = _pick_seq_tile(S, seq_tile)
    n_s = S // tS

    def wspec(shape):
        return pl.BlockSpec(shape, lambda b, s: (0,) * len(shape))

    cond_spec = pl.BlockSpec((1, 1, D), lambda b, s: (b, 0, 0))

    in_specs = [
        pl.BlockSpec((1, tS, D), lambda b, s: (b, s, 0)),   # hidden_states: query/residual tile
        pl.BlockSpec((1, S, D), lambda b, s: (b, 0, 0)),    # hidden_states: full seq for K/V
        cond_spec, cond_spec, cond_spec,                    # shift1 / scale1 / gate1
        cond_spec, cond_spec, cond_spec,                    # shift2 / scale2 / gate2
        wspec((1, D)), wspec((1, D)),                       # norm1 gamma / beta
        wspec((D, D)), wspec((D, D)), wspec((D, D)),        # wq / wk / wv  (bf16)
        wspec((1, head_dim)), wspec((1, head_dim)),         # q-norm gamma / beta
        wspec((1, head_dim)), wspec((1, head_dim)),         # k-norm gamma / beta
        wspec((D, D)), wspec((1, D)),                       # wo (bf16) / bo
        wspec((1, D)), wspec((1, D)),                       # norm2 gamma / beta
        wspec((D, inner)), wspec((1, inner)),               # ff1_w (bf16) / ff1_b
        wspec((inner, D)), wspec((1, D)),                   # ff2_w (bf16) / ff2_b
    ]
    out_spec = pl.BlockSpec((1, tS, D), lambda b, s: (b, s, 0))

    kernel = partial(disc_transformer_kernel, num_heads=num_heads,
                     head_dim=head_dim, eps=eps, qk_eps=qk_eps)

    # TODO(synk): for production shapes, single-buffer the constant-index weight specs
    # (pipeline_mode=pl.Buffered(1)) and set vmem_limit_bytes per-generation (64 MiB v7x);
    # for D not a multiple of 128, pad D so output stores are lane-dense.
    return pl.pallas_call(
        kernel,
        out_shape=jax.ShapeDtypeStruct((B, S, D), jnp.float32),
        grid_spec=pltpu.PrefetchScalarGridSpec(
            num_scalar_prefetch=0,
            grid=(B, n_s),
            in_specs=in_specs,
            out_specs=out_spec,
        ),
        compiler_params=pltpu.CompilerParams(
            dimension_semantics=("parallel", "parallel")),
    )(hs, hs,
      conds[0], conds[1], conds[2], conds[3], conds[4], conds[5],
      p["n1_g"], p["n1_b"],
      wq, wk, wv,
      p["qn_g"], p["qn_b"], p["kn_g"], p["kn_b"],
      wo, p["bo"],
      p["n2_g"], p["n2_b"],
      ff1_w, p["ff1_b"], ff2_w, p["ff2_b"])


# ------------------------------ pure-JAX reference ---------------------------------
def reference(hs, temb, p, *, num_heads, head_dim, eps=1e-5, qk_eps=1e-6):
    def ln(x, w, b, e):
        mu = x.mean(-1, keepdims=True)
        var = ((x - mu) ** 2).mean(-1, keepdims=True)
        return (x - mu) / jnp.sqrt(var + e) * w + b

    B, S, D = hs.shape
    t = jax.nn.silu(temb)

    cond1 = t @ p["ln1_w"] + p["ln1_b"]
    shift1, scale1, gate1 = cond1[:, :D], cond1[:, D:2 * D], cond1[:, 2 * D:]
    nh = ln(hs, p["n1_g"][0], p["n1_b"][0], eps) * (1 + scale1)[:, None, :] + shift1[:, None, :]

    q, k, v = nh @ p["wq"], nh @ p["wk"], nh @ p["wv"]

    def split(x):
        return x.reshape(B, S, num_heads, head_dim).transpose(0, 2, 1, 3)

    qh = ln(split(q), p["qn_g"][0], p["qn_b"][0], qk_eps)
    kh = ln(split(k), p["kn_g"][0], p["kn_b"][0], qk_eps)
    vh = split(v)
    s = jnp.einsum("bhqd,bhkd->bhqk", qh, kh) / math.sqrt(head_dim)
    o = jnp.einsum("bhqk,bhkd->bhqd", jax.nn.softmax(s, axis=-1), vh)
    attn = o.transpose(0, 2, 1, 3).reshape(B, S, D) @ p["wo"] + p["bo"]
    hs1 = hs + gate1[:, None, :] * attn

    cond2 = t @ p["ln2_w"] + p["ln2_b"]
    shift2, scale2, gate2 = cond2[:, :D], cond2[:, D:2 * D], cond2[:, 2 * D:]
    nh2 = ln(hs1, p["n2_g"][0], p["n2_b"][0], eps) * (1 + scale2)[:, None, :] + shift2[:, None, :]
    h1 = jax.nn.gelu(nh2 @ p["ff1_w"] + p["ff1_b"], approximate=True)
    ff = h1 @ p["ff2_w"] + p["ff2_b"]
    return hs1 + gate2[:, None, :] * ff


# ------------------------------------- main -----------------------------------------
if __name__ == "__main__":
    B, S = 2, 8
    num_heads, head_dim = 2, 16
    D = num_heads * head_dim          # dim = 32
    T = 16                            # time_embed_dim
    inner = 4 * D                     # FeedForward default inner_dim = 4*dim

    key = jax.random.PRNGKey(0)
    ks = jax.random.split(key, 32)
    n = lambda i, shape, s=0.05: (s * jax.random.normal(ks[i], shape)).astype(jnp.float32)

    params = {
        # LayerNormZero #1
        "ln1_w": n(0, (T, 3 * D)), "ln1_b": n(1, (1, 3 * D)),
        "n1_g": 1.0 + n(2, (1, D)), "n1_b": n(3, (1, D)),
        # attention (attention_bias=False -> no q/k/v bias; out_bias=True)
        "wq": n(4, (D, D)), "wk": n(5, (D, D)), "wv": n(6, (D, D)),
        "qn_g": 1.0 + n(7, (1, head_dim)), "qn_b": n(8, (1, head_dim)),
        "kn_g": 1.0 + n(9, (1, head_dim)), "kn_b": n(10, (1, head_dim)),
        "wo": n(11, (D, D)), "bo": n(12, (1, D)),
        # LayerNormZero #2
        "ln2_w": n(13, (T, 3 * D)), "ln2_b": n(14, (1, 3 * D)),
        "n2_g": 1.0 + n(15, (1, D)), "n2_b": n(16, (1, D)),
        # FeedForward (gelu-approximate)
        "ff1_w": n(17, (D, inner)), "ff1_b": n(18, (1, inner)),
        "ff2_w": n(19, (inner, D)), "ff2_b": n(20, (1, D)),
    }

    hidden_states = jax.random.normal(ks[30], (B, S, D), dtype=jnp.float32)
    temb = jax.random.normal(ks[31], (B, T), dtype=jnp.float32)

    out = disc_transformer(hidden_states, temb, params,
                           num_heads=num_heads, head_dim=head_dim)
    out = jax.block_until_ready(out)

    ref = reference(hidden_states, temb, params,
                    num_heads=num_heads, head_dim=head_dim)
    assert out.shape == (B, S, D)
    max_err = float(jnp.max(jnp.abs(out - ref)))
    # matmuls run in bf16 (f32 accumulate) -> compare against the f32 reference with a
    # bf16-appropriate tolerance.
    assert jnp.allclose(out, ref, atol=1e-2, rtol=1e-2), max_err
    print("KERNEL_OK")
</pallas_src>

<mosaic_0001>
module attributes {stable_mosaic.version = 11 : i64} {
  func.func @disc_transformer_kernel(%arg0: i32, %arg1: i32, %arg2: memref<1x8x32xf32, #tpu.memory_space<vmem>>, %arg3: memref<1x8x32xf32, #tpu.memory_space<vmem>>, %arg4: memref<1x1x32xf32, #tpu.memory_space<vmem>>, %arg5: memref<1x1x32xf32, #tpu.memory_space<vmem>>, %arg6: memref<1x1x32xf32, #tpu.memory_space<vmem>>, %arg7: memref<1x1x32xf32, #tpu.memory_space<vmem>>, %arg8: memref<1x1x32xf32, #tpu.memory_space<vmem>>, %arg9: memref<1x1x32xf32, #tpu.memory_space<vmem>>, %arg10: memref<1x32xf32, #tpu.memory_space<vmem>>, %arg11: memref<1x32xf32, #tpu.memory_space<vmem>>, %arg12: memref<32x32xbf16, #tpu.memory_space<vmem>>, %arg13: memref<32x32xbf16, #tpu.memory_space<vmem>>, %arg14: memref<32x32xbf16, #tpu.memory_space<vmem>>, %arg15: memref<1x16xf32, #tpu.memory_space<vmem>>, %arg16: memref<1x16xf32, #tpu.memory_space<vmem>>, %arg17: memref<1x16xf32, #tpu.memory_space<vmem>>, %arg18: memref<1x16xf32, #tpu.memory_space<vmem>>, %arg19: memref<32x32xbf16, #tpu.memory_space<vmem>>, %arg20: memref<1x32xf32, #tpu.memory_space<vmem>>, %arg21: memref<1x32xf32, #tpu.memory_space<vmem>>, %arg22: memref<1x32xf32, #tpu.memory_space<vmem>>, %arg23: memref<32x128xbf16, #tpu.memory_space<vmem>>, %arg24: memref<1x128xf32, #tpu.memory_space<vmem>>, %arg25: memref<128x32xbf16, #tpu.memory_space<vmem>>, %arg26: memref<1x32xf32, #tpu.memory_space<vmem>>, %arg27: memref<1x8x32xf32, #tpu.memory_space<vmem>>) attributes {dimension_semantics = [#tpu.dimension_semantics<parallel>, #tpu.dimension_semantics<parallel>], iteration_bounds = array<i64: 2, 1>, scalar_prefetch = 0 : i64, scratch_operands = 0 : i64, tpu.core_type = #tpu.core_type<tc>, window_params = [{transform_indices = @transform_0, window_bounds = array<i64: 1, 8, 32>}, {transform_indices = @transform_1, window_bounds = array<i64: 1, 8, 32>}, {transform_indices = @transform_2, window_bounds = array<i64: 1, 1, 32>}, {transform_indices = @transform_3, window_bounds = array<i64: 1, 1, 32>}, {transform_indices = @transform_4, window_bounds = array<i64: 1, 1, 32>}, {transform_indices = @transform_5, window_bounds = array<i64: 1, 1, 32>}, {transform_indices = @transform_6, window_bounds = array<i64: 1, 1, 32>}, {transform_indices = @transform_7, window_bounds = array<i64: 1, 1, 32>}, {pipeline_mode = #tpu.pipeline_mode<synchronous>, transform_indices = @transform_8, window_bounds = array<i64: 1, 32>}, {pipeline_mode = #tpu.pipeline_mode<synchronous>, transform_indices = @transform_9, window_bounds = array<i64: 1, 32>}, {pipeline_mode = #tpu.pipeline_mode<synchronous>, transform_indices = @transform_10, window_bounds = array<i64: 32, 32>}, {pipeline_mode = #tpu.pipeline_mode<synchronous>, transform_indices = @transform_11, window_bounds = array<i64: 32, 32>}, {pipeline_mode = #tpu.pipeline_mode<synchronous>, transform_indices = @transform_12, window_bounds = array<i64: 32, 32>}, {pipeline_mode = #tpu.pipeline_mode<synchronous>, transform_indices = @transform_13, window_bounds = array<i64: 1, 16>}, {pipeline_mode = #tpu.pipeline_mode<synchronous>, transform_indices = @transform_14, window_bounds = array<i64: 1, 16>}, {pipeline_mode = #tpu.pipeline_mode<synchronous>, transform_indices = @transform_15, window_bounds = array<i64: 1, 16>}, {pipeline_mode = #tpu.pipeline_mode<synchronous>, transform_indices = @transform_16, window_bounds = array<i64: 1, 16>}, {pipeline_mode = #tpu.pipeline_mode<synchronous>, transform_indices = @transform_17, window_bounds = array<i64: 32, 32>}, {pipeline_mode = #tpu.pipeline_mode<synchronous>, transform_indices = @transform_18, window_bounds = array<i64: 1, 32>}, {pipeline_mode = #tpu.pipeline_mode<synchronous>, transform_indices = @transform_19, window_bounds = array<i64: 1, 32>}, {pipeline_mode = #tpu.pipeline_mode<synchronous>, transform_indices = @transform_20, window_bounds = array<i64: 1, 32>}, {pipeline_mode = #tpu.pipeline_mode<synchronous>, transform_indices = @transform_21, window_bounds = array<i64: 32, 128>}, {pipeline_mode = #tpu.pipeline_mode<synchronous>, transform_indices = @transform_22, window_bounds = array<i64: 1, 128>}, {pipeline_mode = #tpu.pipeline_mode<synchronous>, transform_indices = @transform_23, window_bounds = array<i64: 128, 32>}, {pipeline_mode = #tpu.pipeline_mode<synchronous>, transform_indices = @transform_24, window_bounds = array<i64: 1, 32>}, {transform_indices = @transform_25, window_bounds = array<i64: 1, 8, 32>}]} {
    %c0 = arith.constant 0 : index
    %c0_0 = arith.constant 0 : index
    %c0_1 = arith.constant 0 : index
    %0 = vector.load %arg2[%c0, %c0_0, %c0_1] : memref<1x8x32xf32, #tpu.memory_space<vmem>>, vector<1x8x32xf32>
    %1 = vector.shape_cast %0 : vector<1x8x32xf32> to vector<8x32xf32>
    %c0_2 = arith.constant 0 : index
    %c0_3 = arith.constant 0 : index
    %c0_4 = arith.constant 0 : index
    %2 = vector.load %arg3[%c0_2, %c0_3, %c0_4] : memref<1x8x32xf32, #tpu.memory_space<vmem>>, vector<1x8x32xf32>
    %3 = vector.shape_cast %2 : vector<1x8x32xf32> to vector<8x32xf32>
    %c0_5 = arith.constant 0 : index
    %c0_6 = arith.constant 0 : index
    %c0_7 = arith.constant 0 : index
    %4 = vector.load %arg4[%c0_5, %c0_6, %c0_7] : memref<1x1x32xf32, #tpu.memory_space<vmem>>, vector<1x1x32xf32>
    %5 = vector.shape_cast %4 : vector<1x1x32xf32> to vector<1x32xf32>
    %c0_8 = arith.constant 0 : index
    %c0_9 = arith.constant 0 : index
    %c0_10 = arith.constant 0 : index
    %6 = vector.load %arg5[%c0_8, %c0_9, %c0_10] : memref<1x1x32xf32, #tpu.memory_space<vmem>>, vector<1x1x32xf32>
    %7 = vector.shape_cast %6 : vector<1x1x32xf32> to vector<1x32xf32>
    %c0_11 = arith.constant 0 : index
    %c0_12 = arith.constant 0 : index
    %c0_13 = arith.constant 0 : index
    %8 = vector.load %arg6[%c0_11, %c0_12, %c0_13] : memref<1x1x32xf32, #tpu.memory_space<vmem>>, vector<1x1x32xf32>
    %9 = vector.shape_cast %8 : vector<1x1x32xf32> to vector<1x32xf32>
    %c0_14 = arith.constant 0 : index
    %c0_15 = arith.constant 0 : index
    %c0_16 = arith.constant 0 : index
    %10 = vector.load %arg7[%c0_14, %c0_15, %c0_16] : memref<1x1x32xf32, #tpu.memory_space<vmem>>, vector<1x1x32xf32>
    %11 = vector.shape_cast %10 : vector<1x1x32xf32> to vector<1x32xf32>
    %c0_17 = arith.constant 0 : index
    %c0_18 = arith.constant 0 : index
    %c0_19 = arith.constant 0 : index
    %12 = vector.load %arg8[%c0_17, %c0_18, %c0_19] : memref<1x1x32xf32, #tpu.memory_space<vmem>>, vector<1x1x32xf32>
    %13 = vector.shape_cast %12 : vector<1x1x32xf32> to vector<1x32xf32>
    %c0_20 = arith.constant 0 : index
    %c0_21 = arith.constant 0 : index
    %c0_22 = arith.constant 0 : index
    %14 = vector.load %arg9[%c0_20, %c0_21, %c0_22] : memref<1x1x32xf32, #tpu.memory_space<vmem>>, vector<1x1x32xf32>
    %15 = vector.shape_cast %14 : vector<1x1x32xf32> to vector<1x32xf32>
    %c0_23 = arith.constant 0 : index
    %c0_24 = arith.constant 0 : index
    %16 = vector.load %arg10[%c0_23, %c0_24] : memref<1x32xf32, #tpu.memory_space<vmem>>, vector<1x32xf32>
    %c0_25 = arith.constant 0 : index
    %c0_26 = arith.constant 0 : index
    %17 = vector.load %arg11[%c0_25, %c0_26] : memref<1x32xf32, #tpu.memory_space<vmem>>, vector<1x32xf32>
    %cst = arith.constant dense<0.000000e+00> : vector<8xf32>
    %18 = vector.multi_reduction <add>, %1, %cst [1] : vector<8x32xf32> to vector<8xf32>
    %19 = vector.shape_cast %18 : vector<8xf32> to vector<8x1xf32>
    %cst_27 = arith.constant 3.200000e+01 : f32
    %20 = vector.broadcast %cst_27 : f32 to vector<8x1xf32>
    %21 = arith.divf %19, %20 : vector<8x1xf32>
    %22 = vector.broadcast %21 : vector<8x1xf32> to vector<8x32xf32>
    %23 = arith.subf %1, %22 : vector<8x32xf32>
    %24 = arith.mulf %23, %23 : vector<8x32xf32>
    %cst_28 = arith.constant dense<0.000000e+00> : vector<8xf32>
    %25 = vector.multi_reduction <add>, %24, %cst_28 [1] : vector<8x32xf32> to vector<8xf32>
    %26 = vector.shape_cast %25 : vector<8xf32> to vector<8x1xf32>
    %cst_29 = arith.constant 3.200000e+01 : f32
    %27 = vector.broadcast %cst_29 : f32 to vector<8x1xf32>
    %28 = arith.divf %26, %27 : vector<8x1xf32>
    %29 = vector.broadcast %21 : vector<8x1xf32> to vector<8x32xf32>
    %30 = arith.subf %1, %29 : vector<8x32xf32>
    %cst_30 = arith.constant 9.99999974E-6 : f32
    %31 = vector.broadcast %cst_30 : f32 to vector<8x1xf32>
    %32 = arith.addf %28, %31 : vector<8x1xf32>
    %33 = math.rsqrt %32 : vector<8x1xf32>
    %34 = vector.broadcast %33 : vector<8x1xf32> to vector<8x32xf32>
    %35 = arith.mulf %30, %34 : vector<8x32xf32>
    %36 = vector.broadcast %16 : vector<1x32xf32> to vector<8x32xf32>
    %37 = arith.mulf %35, %36 : vector<8x32xf32>
    %38 = vector.broadcast %17 : vector<1x32xf32> to vector<8x32xf32>
    %39 = arith.addf %37, %38 : vector<8x32xf32>
    %cst_31 = arith.constant 1.000000e+00 : f32
    %40 = vector.broadcast %cst_31 : f32 to vector<1x32xf32>
    %41 = arith.addf %40, %7 : vector<1x32xf32>
    %42 = vector.broadcast %41 : vector<1x32xf32> to vector<8x32xf32>
    %43 = arith.mulf %39, %42 : vector<8x32xf32>
    %44 = vector.broadcast %5 : vector<1x32xf32> to vector<8x32xf32>
    %45 = arith.addf %43, %44 : vector<8x32xf32>
    %cst_32 = arith.constant dense<0.000000e+00> : vector<8xf32>
    %46 = vector.multi_reduction <add>, %3, %cst_32 [1] : vector<8x32xf32> to vector<8xf32>
    %47 = vector.shape_cast %46 : vector<8xf32> to vector<8x1xf32>
    %cst_33 = arith.constant 3.200000e+01 : f32
    %48 = vector.broadcast %cst_33 : f32 to vector<8x1xf32>
    %49 = arith.divf %47, %48 : vector<8x1xf32>
    %50 = vector.broadcast %49 : vector<8x1xf32> to vector<8x32xf32>
    %51 = arith.subf %3, %50 : vector<8x32xf32>
    %52 = arith.mulf %51, %51 : vector<8x32xf32>
    %cst_34 = arith.constant dense<0.000000e+00> : vector<8xf32>
    %53 = vector.multi_reduction <add>, %52, %cst_34 [1] : vector<8x32xf32> to vector<8xf32>
    %54 = vector.shape_cast %53 : vector<8xf32> to vector<8x1xf32>
    %cst_35 = arith.constant 3.200000e+01 : f32
    %55 = vector.broadcast %cst_35 : f32 to vector<8x1xf32>
    %56 = arith.divf %54, %55 : vector<8x1xf32>
    %57 = vector.broadcast %49 : vector<8x1xf32> to vector<8x32xf32>
    %58 = arith.subf %3, %57 : vector<8x32xf32>
    %cst_36 = arith.constant 9.99999974E-6 : f32
    %59 = vector.broadcast %cst_36 : f32 to vector<8x1xf32>
    %60 = arith.addf %56, %59 : vector<8x1xf32>
    %61 = math.rsqrt %60 : vector<8x1xf32>
    %62 = vector.broadcast %61 : vector<8x1xf32> to vector<8x32xf32>
    %63 = arith.mulf %58, %62 : vector<8x32xf32>
    %64 = vector.broadcast %16 : vector<1x32xf32> to vector<8x32xf32>
    %65 = arith.mulf %63, %64 : vector<8x32xf32>
    %66 = vector.broadcast %17 : vector<1x32xf32> to vector<8x32xf32>
    %67 = arith.addf %65, %66 : vector<8x32xf32>
    %cst_37 = arith.constant 1.000000e+00 : f32
    %68 = vector.broadcast %cst_37 : f32 to vector<1x32xf32>
    %69 = arith.addf %68, %7 : vector<1x32xf32>
    %70 = vector.broadcast %69 : vector<1x32xf32> to vector<8x32xf32>
    %71 = arith.mulf %67, %70 : vector<8x32xf32>
    %72 = vector.broadcast %5 : vector<1x32xf32> to vector<8x32xf32>
    %73 = arith.addf %71, %72 : vector<8x32xf32>
    %74 = arith.truncf %45 : vector<8x32xf32> to vector<8x32xbf16>
    %c0_38 = arith.constant 0 : index
    %c0_39 = arith.constant 0 : index
    %75 = vector.load %arg12[%c0_38, %c0_39] : memref<32x32xbf16, #tpu.memory_space<vmem>>, vector<32x32xbf16>
    %cst_40 = arith.constant dense<0.000000e+00> : vector<8x32xf32>
    %76 = tpu.matmul %74, %75, %cst_40 {dimension_numbers = #tpu.dot_dimension_numbers<[1], [0], [0], [1], [0, 0, 1, 1], [], []>} : vector<8x32xbf16>, vector<32x32xbf16>, vector<8x32xf32> -> vector<8x32xf32>
    %77 = arith.truncf %73 : vector<8x32xf32> to vector<8x32xbf16>
    %c0_41 = arith.constant 0 : index
    %c0_42 = arith.constant 0 : index
    %78 = vector.load %arg13[%c0_41, %c0_42] : memref<32x32xbf16, #tpu.memory_space<vmem>>, vector<32x32xbf16>
    %cst_43 = arith.constant dense<0.000000e+00> : vector<8x32xf32>
    %79 = tpu.matmul %77, %78, %cst_43 {dimension_numbers = #tpu.dot_dimension_numbers<[1], [0], [0], [1], [0, 0, 1, 1], [], []>} : vector<8x32xbf16>, vector<32x32xbf16>, vector<8x32xf32> -> vector<8x32xf32>
    %80 = arith.truncf %73 : vector<8x32xf32> to vector<8x32xbf16>
    %c0_44 = arith.constant 0 : index
    %c0_45 = arith.constant 0 : index
    %81 = vector.load %arg14[%c0_44, %c0_45] : memref<32x32xbf16, #tpu.memory_space<vmem>>, vector<32x32xbf16>
    %cst_46 = arith.constant dense<0.000000e+00> : vector<8x32xf32>
    %82 = tpu.matmul %80, %81, %cst_46 {dimension_numbers = #tpu.dot_dimension_numbers<[1], [0], [0], [1], [0, 0, 1, 1], [], []>} : vector<8x32xbf16>, vector<32x32xbf16>, vector<8x32xf32> -> vector<8x32xf32>
    %83 = vector.extract_strided_slice %76 {offsets = [0, 0], sizes = [8, 16], strides = [1, 1]} : vector<8x32xf32> to vector<8x16xf32>
    %84 = vector.extract_strided_slice %76 {offsets = [0, 16], sizes = [8, 16], strides = [1, 1]} : vector<8x32xf32> to vector<8x16xf32>
    %85 = vector.shape_cast %83 : vector<8x16xf32> to vector<1x8x16xf32>
    %86 = vector.shape_cast %84 : vector<8x16xf32> to vector<1x8x16xf32>
    %87 = tpu.concatenate %85, %86 in 0 : vector<1x8x16xf32>, vector<1x8x16xf32> -> vector<2x8x16xf32>
    %c0_47 = arith.constant 0 : index
    %c0_48 = arith.constant 0 : index
    %88 = vector.load %arg15[%c0_47, %c0_48] : memref<1x16xf32, #tpu.memory_space<vmem>>, vector<1x16xf32>
    %c0_49 = arith.constant 0 : index
    %c0_50 = arith.constant 0 : index
    %89 = vector.load %arg16[%c0_49, %c0_50] : memref<1x16xf32, #tpu.memory_space<vmem>>, vector<1x16xf32>
    %cst_51 = arith.constant dense<0.000000e+00> : vector<2x8xf32>
    %90 = vector.multi_reduction <add>, %87, %cst_51 [2] : vector<2x8x16xf32> to vector<2x8xf32>
    %91 = vector.shape_cast %90 : vector<2x8xf32> to vector<2x8x1xf32>
    %cst_52 = arith.constant 1.600000e+01 : f32
    %92 = vector.broadcast %cst_52 : f32 to vector<2x8x1xf32>
    %93 = arith.divf %91, %92 : vector<2x8x1xf32>
    %94 = vector.broadcast %93 : vector<2x8x1xf32> to vector<2x8x16xf32>
    %95 = arith.subf %87, %94 : vector<2x8x16xf32>
    %96 = arith.mulf %95, %95 : vector<2x8x16xf32>
    %cst_53 = arith.constant dense<0.000000e+00> : vector<2x8xf32>
    %97 = vector.multi_reduction <add>, %96, %cst_53 [2] : vector<2x8x16xf32> to vector<2x8xf32>
    %98 = vector.shape_cast %97 : vector<2x8xf32> to vector<2x8x1xf32>
    %cst_54 = arith.constant 1.600000e+01 : f32
    %99 = vector.broadcast %cst_54 : f32 to vector<2x8x1xf32>
    %100 = arith.divf %98, %99 : vector<2x8x1xf32>
    %101 = vector.broadcast %93 : vector<2x8x1xf32> to vector<2x8x16xf32>
    %102 = arith.subf %87, %101 : vector<2x8x16xf32>
    %cst_55 = arith.constant 9.99999997E-7 : f32
    %103 = vector.broadcast %cst_55 : f32 to vector<2x8x1xf32>
    %104 = arith.addf %100, %103 : vector<2x8x1xf32>
    %105 = math.rsqrt %104 : vector<2x8x1xf32>
    %106 = vector.broadcast %105 : vector<2x8x1xf32> to vector<2x8x16xf32>
    %107 = arith.mulf %102, %106 : vector<2x8x16xf32>
    %108 = vector.shape_cast %88 : vector<1x16xf32> to vector<1x1x16xf32>
    %109 = vector.broadcast %108 : vector<1x1x16xf32> to vector<2x8x16xf32>
    %110 = arith.mulf %107, %109 : vector<2x8x16xf32>
    %111 = vector.shape_cast %89 : vector<1x16xf32> to vector<1x1x16xf32>
    %112 = vector.broadcast %111 : vector<1x1x16xf32> to vector<2x8x16xf32>
    %113 = arith.addf %110, %112 : vector<2x8x16xf32>
    %114 = vector.extract_strided_slice %79 {offsets = [0, 0], sizes = [8, 16], strides = [1, 1]} : vector<8x32xf32> to vector<8x16xf32>
    %115 = vector.extract_strided_slice %79 {offsets = [0, 16], sizes = [8, 16], strides = [1, 1]} : vector<8x32xf32> to vector<8x16xf32>
    %116 = vector.shape_cast %114 : vector<8x16xf32> to vector<1x8x16xf32>
    %117 = vector.shape_cast %115 : vector<8x16xf32> to vector<1x8x16xf32>
    %118 = tpu.concatenate %116, %117 in 0 : vector<1x8x16xf32>, vector<1x8x16xf32> -> vector<2x8x16xf32>
    %c0_56 = arith.constant 0 : index
    %c0_57 = arith.constant 0 : index
    %119 = vector.load %arg17[%c0_56, %c0_57] : memref<1x16xf32, #tpu.memory_space<vmem>>, vector<1x16xf32>
    %c0_58 = arith.constant 0 : index
    %c0_59 = arith.constant 0 : index
    %120 = vector.load %arg18[%c0_58, %c0_59] : memref<1x16xf32, #tpu.memory_space<vmem>>, vector<1x16xf32>
    %cst_60 = arith.constant dense<0.000000e+00> : vector<2x8xf32>
    %121 = vector.multi_reduction <add>, %118, %cst_60 [2] : vector<2x8x16xf32> to vector<2x8xf32>
    %122 = vector.shape_cast %121 : vector<2x8xf32> to vector<2x8x1xf32>
    %cst_61 = arith.constant 1.600000e+01 : f32
    %123 = vector.broadcast %cst_61 : f32 to vector<2x8x1xf32>
    %124 = arith.divf %122, %123 : vector<2x8x1xf32>
    %125 = vector.broadcast %124 : vector<2x8x1xf32> to vector<2x8x16xf32>
    %126 = arith.subf %118, %125 : vector<2x8x16xf32>
    %127 = arith.mulf %126, %126 : vector<2x8x16xf32>
    %cst_62 = arith.constant dense<0.000000e+00> : vector<2x8xf32>
    %128 = vector.multi_reduction <add>, %127, %cst_62 [2] : vector<2x8x16xf32> to vector<2x8xf32>
    %129 = vector.shape_cast %128 : vector<2x8xf32> to vector<2x8x1xf32>
    %cst_63 = arith.constant 1.600000e+01 : f32
    %130 = vector.broadcast %cst_63 : f32 to vector<2x8x1xf32>
    %131 = arith.divf %129, %130 : vector<2x8x1xf32>
    %132 = vector.broadcast %124 : vector<2x8x1xf32> to vector<2x8x16xf32>
    %133 = arith.subf %118, %132 : vector<2x8x16xf32>
    %cst_64 = arith.constant 9.99999997E-7 : f32
    %134 = vector.broadcast %cst_64 : f32 to vector<2x8x1xf32>
    %135 = arith.addf %131, %134 : vector<2x8x1xf32>
    %136 = math.rsqrt %135 : vector<2x8x1xf32>
    %137 = vector.broadcast %136 : vector<2x8x1xf32> to vector<2x8x16xf32>
    %138 = arith.mulf %133, %137 : vector<2x8x16xf32>
    %139 = vector.shape_cast %119 : vector<1x16xf32> to vector<1x1x16xf32>
    %140 = vector.broadcast %139 : vector<1x1x16xf32> to vector<2x8x16xf32>
    %141 = arith.mulf %138, %140 : vector<2x8x16xf32>
    %142 = vector.shape_cast %120 : vector<1x16xf32> to vector<1x1x16xf32>
    %143 = vector.broadcast %142 : vector<1x1x16xf32> to vector<2x8x16xf32>
    %144 = arith.addf %141, %143 : vector<2x8x16xf32>
    %145 = vector.extract_strided_slice %82 {offsets = [0, 0], sizes = [8, 16], strides = [1, 1]} : vector<8x32xf32> to vector<8x16xf32>
    %146 = vector.extract_strided_slice %82 {offsets = [0, 16], sizes = [8, 16], strides = [1, 1]} : vector<8x32xf32> to vector<8x16xf32>
    %147 = vector.shape_cast %145 : vector<8x16xf32> to vector<1x8x16xf32>
    %148 = vector.shape_cast %146 : vector<8x16xf32> to vector<1x8x16xf32>
    %149 = tpu.concatenate %147, %148 in 0 : vector<1x8x16xf32>, vector<1x8x16xf32> -> vector<2x8x16xf32>
    %150 = arith.truncf %113 : vector<2x8x16xf32> to vector<2x8x16xbf16>
    %151 = arith.truncf %144 : vector<2x8x16xf32> to vector<2x8x16xbf16>
    "tpu.trace_start"() <{level = 10 : i32, message = "hqd,hkd->hqk"}> : () -> ()
    %cst_65 = arith.constant dense<0.000000e+00> : vector<2x8x8xf32>
    %152 = tpu.matmul %150, %151, %cst_65 {dimension_numbers = #tpu.dot_dimension_numbers<[2], [2], [1], [1], [0, 0, 0, 1, 1, 1], [0], [0]>} : vector<2x8x16xbf16>, vector<2x8x16xbf16>, vector<2x8x8xf32> -> vector<2x8x8xf32>
    "tpu.trace_stop"() : () -> ()
    %cst_66 = arith.constant 2.500000e-01 : f32
    %153 = vector.broadcast %cst_66 : f32 to vector<2x8x8xf32>
    %154 = arith.mulf %152, %153 : vector<2x8x8xf32>
    %cst_67 = arith.constant dense<0xFF800000> : vector<2x8xf32>
    %155 = vector.multi_reduction <maximumf>, %154, %cst_67 [2] : vector<2x8x8xf32> to vector<2x8xf32>
    %156 = vector.shape_cast %155 : vector<2x8xf32> to vector<2x8x1xf32>
    %157 = vector.broadcast %156 : vector<2x8x1xf32> to vector<2x8x8xf32>
    %158 = arith.subf %154, %157 : vector<2x8x8xf32>
    %159 = math.exp %158 : vector<2x8x8xf32>
    %cst_68 = arith.constant dense<0.000000e+00> : vector<2x8xf32>
    %160 = vector.multi_reduction <add>, %159, %cst_68 [2] : vector<2x8x8xf32> to vector<2x8xf32>
    %161 = vector.shape_cast %160 : vector<2x8xf32> to vector<2x8x1xf32>
    %162 = tpu.reciprocal %161 {approx = true} : vector<2x8x1xf32> -> vector<2x8x1xf32>
    %163 = vector.broadcast %162 : vector<2x8x1xf32> to vector<2x8x8xf32>
    %164 = arith.mulf %159, %163 : vector<2x8x8xf32>
    %165 = arith.truncf %164 : vector<2x8x8xf32> to vector<2x8x8xbf16>
    %166 = arith.truncf %149 : vector<2x8x16xf32> to vector<2x8x16xbf16>
    "tpu.trace_start"() <{level = 10 : i32, message = "hqk,hkd->hqd"}> : () -> ()
    %cst_69 = arith.constant dense<0.000000e+00> : vector<2x8x16xf32>
    %167 = tpu.matmul %165, %166, %cst_69 {dimension_numbers = #tpu.dot_dimension_numbers<[2], [1], [1], [2], [0, 0, 0, 1, 1, 2], [0], [0]>} : vector<2x8x8xbf16>, vector<2x8x16xbf16>, vector<2x8x16xf32> -> vector<2x8x16xf32>
    "tpu.trace_stop"() : () -> ()
    %168 = vector.extract_strided_slice %167 {offsets = [0, 0, 0], sizes = [1, 8, 16], strides = [1, 1, 1]} : vector<2x8x16xf32> to vector<1x8x16xf32>
    %169 = vector.shape_cast %168 : vector<1x8x16xf32> to vector<8x16xf32>
    %170 = vector.extract_strided_slice %167 {offsets = [1, 0, 0], sizes = [1, 8, 16], strides = [1, 1, 1]} : vector<2x8x16xf32> to vector<1x8x16xf32>
    %171 = vector.shape_cast %170 : vector<1x8x16xf32> to vector<8x16xf32>
    %172 = tpu.concatenate %169, %171 in 1 : vector<8x16xf32>, vector<8x16xf32> -> vector<8x32xf32>
    %173 = arith.truncf %172 : vector<8x32xf32> to vector<8x32xbf16>
    %c0_70 = arith.constant 0 : index
    %c0_71 = arith.constant 0 : index
    %174 = vector.load %arg19[%c0_70, %c0_71] : memref<32x32xbf16, #tpu.memory_space<vmem>>, vector<32x32xbf16>
    %cst_72 = arith.constant dense<0.000000e+00> : vector<8x32xf32>
    %175 = tpu.matmul %173, %174, %cst_72 {dimension_numbers = #tpu.dot_dimension_numbers<[1], [0], [0], [1], [0, 0, 1, 1], [], []>} : vector<8x32xbf16>, vector<32x32xbf16>, vector<8x32xf32> -> vector<8x32xf32>
    %c0_73 = arith.constant 0 : index
    %c0_74 = arith.constant 0 : index
    %176 = vector.load %arg20[%c0_73, %c0_74] : memref<1x32xf32, #tpu.memory_space<vmem>>, vector<1x32xf32>
    %177 = vector.broadcast %176 : vector<1x32xf32> to vector<8x32xf32>
    %178 = arith.addf %175, %177 : vector<8x32xf32>
    %179 = vector.broadcast %9 : vector<1x32xf32> to vector<8x32xf32>
    %180 = arith.mulf %179, %178 : vector<8x32xf32>
    %181 = arith.addf %1, %180 : vector<8x32xf32>
    %c0_75 = arith.constant 0 : index
    %c0_76 = arith.constant 0 : index
    %182 = vector.load %arg21[%c0_75, %c0_76] : memref<1x32xf32, #tpu.memory_space<vmem>>, vector<1x32xf32>
    %c0_77 = arith.constant 0 : index
    %c0_78 = arith.constant 0 : index
    %183 = vector.load %arg22[%c0_77, %c0_78] : memref<1x32xf32, #tpu.memory_space<vmem>>, vector<1x32xf32>
    %cst_79 = arith.constant dense<0.000000e+00> : vector<8xf32>
    %184 = vector.multi_reduction <add>, %181, %cst_79 [1] : vector<8x32xf32> to vector<8xf32>
    %185 = vector.shape_cast %184 : vector<8xf32> to vector<8x1xf32>
    %cst_80 = arith.constant 3.200000e+01 : f32
    %186 = vector.broadcast %cst_80 : f32 to vector<8x1xf32>
    %187 = arith.divf %185, %186 : vector<8x1xf32>
    %188 = vector.broadcast %187 : vector<8x1xf32> to vector<8x32xf32>
    %189 = arith.subf %181, %188 : vector<8x32xf32>
    %190 = arith.mulf %189, %189 : vector<8x32xf32>
    %cst_81 = arith.constant dense<0.000000e+00> : vector<8xf32>
    %191 = vector.multi_reduction <add>, %190, %cst_81 [1] : vector<8x32xf32> to vector<8xf32>
    %192 = vector.shape_cast %191 : vector<8xf32> to vector<8x1xf32>
    %cst_82 = arith.constant 3.200000e+01 : f32
    %193 = vector.broadcast %cst_82 : f32 to vector<8x1xf32>
    %194 = arith.divf %192, %193 : vector<8x1xf32>
    %195 = vector.broadcast %187 : vector<8x1xf32> to vector<8x32xf32>
    %196 = arith.subf %181, %195 : vector<8x32xf32>
    %cst_83 = arith.constant 9.99999974E-6 : f32
    %197 = vector.broadcast %cst_83 : f32 to vector<8x1xf32>
    %198 = arith.addf %194, %197 : vector<8x1xf32>
    %199 = math.rsqrt %198 : vector<8x1xf32>
    %200 = vector.broadcast %199 : vector<8x1xf32> to vector<8x32xf32>
    %201 = arith.mulf %196, %200 : vector<8x32xf32>
    %202 = vector.broadcast %182 : vector<1x32xf32> to vector<8x32xf32>
    %203 = arith.mulf %201, %202 : vector<8x32xf32>
    %204 = vector.broadcast %183 : vector<1x32xf32> to vector<8x32xf32>
    %205 = arith.addf %203, %204 : vector<8x32xf32>
    %cst_84 = arith.constant 1.000000e+00 : f32
    %206 = vector.broadcast %cst_84 : f32 to vector<1x32xf32>
    %207 = arith.addf %206, %13 : vector<1x32xf32>
    %208 = vector.broadcast %207 : vector<1x32xf32> to vector<8x32xf32>
    %209 = arith.mulf %205, %208 : vector<8x32xf32>
    %210 = vector.broadcast %11 : vector<1x32xf32> to vector<8x32xf32>
    %211 = arith.addf %209, %210 : vector<8x32xf32>
    %212 = arith.truncf %211 : vector<8x32xf32> to vector<8x32xbf16>
    %c0_85 = arith.constant 0 : index
    %c0_86 = arith.constant 0 : index
    %213 = vector.load %arg23[%c0_85, %c0_86] : memref<32x128xbf16, #tpu.memory_space<vmem>>, vector<32x128xbf16>
    %cst_87 = arith.constant dense<0.000000e+00> : vector<8x128xf32>
    %214 = tpu.matmul %212, %213, %cst_87 {dimension_numbers = #tpu.dot_dimension_numbers<[1], [0], [0], [1], [0, 0, 1, 1], [], []>} : vector<8x32xbf16>, vector<32x128xbf16>, vector<8x128xf32> -> vector<8x128xf32>
    %c0_88 = arith.constant 0 : index
    %c0_89 = arith.constant 0 : index
    %215 = vector.load %arg24[%c0_88, %c0_89] : memref<1x128xf32, #tpu.memory_space<vmem>>, vector<1x128xf32>
    %216 = vector.broadcast %215 : vector<1x128xf32> to vector<8x128xf32>
    %217 = arith.addf %214, %216 : vector<8x128xf32>
    %cst_90 = arith.constant 5.000000e-01 : f32
    %218 = vector.broadcast %cst_90 : f32 to vector<8x128xf32>
    %219 = arith.mulf %218, %217 : vector<8x128xf32>
    %cst_91 = arith.constant 4.471500e-02 : f32
    %220 = vector.broadcast %cst_91 : f32 to vector<8x128xf32>
    %221 = arith.mulf %220, %217 : vector<8x128xf32>
    %222 = arith.mulf %221, %217 : vector<8x128xf32>
    %223 = arith.mulf %222, %217 : vector<8x128xf32>
    %224 = arith.addf %217, %223 : vector<8x128xf32>
    %cst_92 = arith.constant 0.797884583 : f32
    %225 = vector.broadcast %cst_92 : f32 to vector<8x128xf32>
    %226 = arith.mulf %225, %224 : vector<8x128xf32>
    %227 = math.tanh %226 : vector<8x128xf32>
    %cst_93 = arith.constant 1.000000e+00 : f32
    %228 = vector.broadcast %cst_93 : f32 to vector<8x128xf32>
    %229 = arith.addf %228, %227 : vector<8x128xf32>
    %230 = arith.mulf %219, %229 : vector<8x128xf32>
    %231 = arith.truncf %230 : vector<8x128xf32> to vector<8x128xbf16>
    %c0_94 = arith.constant 0 : index
    %c0_95 = arith.constant 0 : index
    %232 = vector.load %arg25[%c0_94, %c0_95] : memref<128x32xbf16, #tpu.memory_space<vmem>>, vector<128x32xbf16>
    %cst_96 = arith.constant dense<0.000000e+00> : vector<8x32xf32>
    %233 = tpu.matmul %231, %232, %cst_96 {dimension_numbers = #tpu.dot_dimension_numbers<[1], [0], [0], [1], [0, 0, 1, 1], [], []>} : vector<8x128xbf16>, vector<128x32xbf16>, vector<8x32xf32> -> vector<8x32xf32>
    %c0_97 = arith.constant 0 : index
    %c0_98 = arith.constant 0 : index
    %234 = vector.load %arg26[%c0_97, %c0_98] : memref<1x32xf32, #tpu.memory_space<vmem>>, vector<1x32xf32>
    %235 = vector.broadcast %234 : vector<1x32xf32> to vector<8x32xf32>
    %236 = arith.addf %233, %235 : vector<8x32xf32>
    %237 = vector.broadcast %15 : vector<1x32xf32> to vector<8x32xf32>
    %238 = arith.mulf %237, %236 : vector<8x32xf32>
    %239 = arith.addf %181, %238 : vector<8x32xf32>
    %c0_99 = arith.constant 0 : index
    %c0_100 = arith.constant 0 : index
    %c0_101 = arith.constant 0 : index
    %240 = vector.load %arg27[%c0_99, %c0_100, %c0_101] : memref<1x8x32xf32, #tpu.memory_space<vmem>>, vector<1x8x32xf32>
    %241 = vector.shape_cast %240 : vector<1x8x32xf32> to vector<8x32xf32>
    %242 = vector.shape_cast %239 : vector<8x32xf32> to vector<1x8x32xf32>
    tpu.vector_store %arg27[%c0_99, %c0_100, %c0_101], %242 {strides = array<i32>} : memref<1x8x32xf32, #tpu.memory_space<vmem>>, vector<1x8x32xf32>,
    return
  }
  func.func @transform_0(%arg0: i32, %arg1: i32) -> (i32, i32, i32) {
    %c0_i32 = arith.constant 0 : i32
    %c0_i32_0 = arith.constant 0 : i32
    return %arg0, %arg1, %c0_i32 : i32, i32, i32
  }
  func.func @transform_1(%arg0: i32, %arg1: i32) -> (i32, i32, i32) {
    %c0_i32 = arith.constant 0 : i32
    %c0_i32_0 = arith.constant 0 : i32
    %c0_i32_1 = arith.constant 0 : i32
    return %arg0, %c0_i32, %c0_i32_0 : i32, i32, i32
  }
  func.func @transform_2(%arg0: i32, %arg1: i32) -> (i32, i32, i32) {
    %c0_i32 = arith.constant 0 : i32
    %c0_i32_0 = arith.constant 0 : i32
    %c0_i32_1 = arith.constant 0 : i32
    return %arg0, %c0_i32, %c0_i32_0 : i32, i32, i32
  }
  func.func @transform_3(%arg0: i32, %arg1: i32) -> (i32, i32, i32) {
    %c0_i32 = arith.constant 0 : i32
    %c0_i32_0 = arith.constant 0 : i32
    %c0_i32_1 = arith.constant 0 : i32
    return %arg0, %c0_i32, %c0_i32_0 : i32, i32, i32
  }
  func.func @transform_4(%arg0: i32, %arg1: i32) -> (i32, i32, i32) {
    %c0_i32 = arith.constant 0 : i32
    %c0_i32_0 = arith.constant 0 : i32
    %c0_i32_1 = arith.constant 0 : i32
    return %arg0, %c0_i32, %c0_i32_0 : i32, i32, i32
  }
  func.func @transform_5(%arg0: i32, %arg1: i32) -> (i32, i32, i32) {
    %c0_i32 = arith.constant 0 : i32
    %c0_i32_0 = arith.constant 0 : i32
    %c0_i32_1 = arith.constant 0 : i32
    return %arg0, %c0_i32, %c0_i32_0 : i32, i32, i32
  }
  func.func @transform_6(%arg0: i32, %arg1: i32) -> (i32, i32, i32) {
    %c0_i32 = arith.constant 0 : i32
    %c0_i32_0 = arith.constant 0 : i32
    %c0_i32_1 = arith.constant 0 : i32
    return %arg0, %c0_i32, %c0_i32_0 : i32, i32, i32
  }
  func.func @transform_7(%arg0: i32, %arg1: i32) -> (i32, i32, i32) {
    %c0_i32 = arith.constant 0 : i32
    %c0_i32_0 = arith.constant 0 : i32
    %c0_i32_1 = arith.constant 0 : i32
    return %arg0, %c0_i32, %c0_i32_0 : i32, i32, i32
  }
  func.func @transform_8(%arg0: i32, %arg1: i32) -> (i32, i32) {
    %c0_i32 = arith.constant 0 : i32
    %c0_i32_0 = arith.constant 0 : i32
    %c0_i32_1 = arith.constant 0 : i32
    return %c0_i32, %c0_i32_0 : i32, i32
  }
  func.func @transform_9(%arg0: i32, %arg1: i32) -> (i32, i32) {
    %c0_i32 = arith.constant 0 : i32
    %c0_i32_0 = arith.constant 0 : i32
    %c0_i32_1 = arith.constant 0 : i32
    return %c0_i32, %c0_i32_0 : i32, i32
  }
  func.func @transform_10(%arg0: i32, %arg1: i32) -> (i32, i32) {
    %c0_i32 = arith.constant 0 : i32
    %c0_i32_0 = arith.constant 0 : i32
    %c0_i32_1 = arith.constant 0 : i32
    return %c0_i32, %c0_i32_0 : i32, i32
  }
  func.func @transform_11(%arg0: i32, %arg1: i32) -> (i32, i32) {
    %c0_i32 = arith.constant 0 : i32
    %c0_i32_0 = arith.constant 0 : i32
    %c0_i32_1 = arith.constant 0 : i32
    return %c0_i32, %c0_i32_0 : i32, i32
  }
  func.func @transform_12(%arg0: i32, %arg1: i32) -> (i32, i32) {
    %c0_i32 = arith.constant 0 : i32
    %c0_i32_0 = arith.constant 0 : i32
    %c0_i32_1 = arith.constant 0 : i32
    return %c0_i32, %c0_i32_0 : i32, i32
  }
  func.func @transform_13(%arg0: i32, %arg1: i32) -> (i32, i32) {
    %c0_i32 = arith.constant 0 : i32
    %c0_i32_0 = arith.constant 0 : i32
    %c0_i32_1 = arith.constant 0 : i32
    return %c0_i32, %c0_i32_0 : i32, i32
  }
  func.func @transform_14(%arg0: i32, %arg1: i32) -> (i32, i32) {
    %c0_i32 = arith.constant 0 : i32
    %c0_i32_0 = arith.constant 0 : i32
    %c0_i32_1 = arith.constant 0 : i32
    return %c0_i32, %c0_i32_0 : i32, i32
  }
  func.func @transform_15(%arg0: i32, %arg1: i32) -> (i32, i32) {
    %c0_i32 = arith.constant 0 : i32
    %c0_i32_0 = arith.constant 0 : i32
    %c0_i32_1 = arith.constant 0 : i32
    return %c0_i32, %c0_i32_0 : i32, i32
  }
  func.func @transform_16(%arg0: i32, %arg1: i32) -> (i32, i32) {
    %c0_i32 = arith.constant 0 : i32
    %c0_i32_0 = arith.constant 0 : i32
    %c0_i32_1 = arith.constant 0 : i32
    return %c0_i32, %c0_i32_0 : i32, i32
  }
  func.func @transform_17(%arg0: i32, %arg1: i32) -> (i32, i32) {
    %c0_i32 = arith.constant 0 : i32
    %c0_i32_0 = arith.constant 0 : i32
    %c0_i32_1 = arith.constant 0 : i32
    return %c0_i32, %c0_i32_0 : i32, i32
  }
  func.func @transform_18(%arg0: i32, %arg1: i32) -> (i32, i32) {
    %c0_i32 = arith.constant 0 : i32
    %c0_i32_0 = arith.constant 0 : i32
    %c0_i32_1 = arith.constant 0 : i32
    return %c0_i32, %c0_i32_0 : i32, i32
  }
  func.func @transform_19(%arg0: i32, %arg1: i32) -> (i32, i32) {
    %c0_i32 = arith.constant 0 : i32
    %c0_i32_0 = arith.constant 0 : i32
    %c0_i32_1 = arith.constant 0 : i32
    return %c0_i32, %c0_i32_0 : i32, i32
  }
  func.func @transform_20(%arg0: i32, %arg1: i32) -> (i32, i32) {
    %c0_i32 = arith.constant 0 : i32
    %c0_i32_0 = arith.constant 0 : i32
    %c0_i32_1 = arith.constant 0 : i32
    return %c0_i32, %c0_i32_0 : i32, i32
  }
  func.func @transform_21(%arg0: i32, %arg1: i32) -> (i32, i32) {
    %c0_i32 = arith.constant 0 : i32
    %c0_i32_0 = arith.constant 0 : i32
    %c0_i32_1 = arith.constant 0 : i32
    return %c0_i32, %c0_i32_0 : i32, i32
  }
  func.func @transform_22(%arg0: i32, %arg1: i32) -> (i32, i32) {
    %c0_i32 = arith.constant 0 : i32
    %c0_i32_0 = arith.constant 0 : i32
    %c0_i32_1 = arith.constant 0 : i32
    return %c0_i32, %c0_i32_0 : i32, i32
  }
  func.func @transform_23(%arg0: i32, %arg1: i32) -> (i32, i32) {
    %c0_i32 = arith.constant 0 : i32
    %c0_i32_0 = arith.constant 0 : i32
    %c0_i32_1 = arith.constant 0 : i32
    return %c0_i32, %c0_i32_0 : i32, i32
  }
  func.func @transform_24(%arg0: i32, %arg1: i32) -> (i32, i32) {
    %c0_i32 = arith.constant 0 : i32
    %c0_i32_0 = arith.constant 0 : i32
    %c0_i32_1 = arith.constant 0 : i32
    return %c0_i32, %c0_i32_0 : i32, i32
  }
  func.func @transform_25(%arg0: i32, %arg1: i32) -> (i32, i32, i32) {
    %c0_i32 = arith.constant 0 : i32
    %c0_i32_0 = arith.constant 0 : i32
    return %arg0, %arg1, %c0_i32 : i32, i32, i32
  }
}

</mosaic_0001>

<llo_original>
// kernel: tpu_custom_call.1
$region0: #{tpu_custom_call.1}
  #allocation0 [shape = 'u32[]', space=smem, size = 0x4, offset = 0x4, fixed_abs, tag = 'smem constant byte address 0x4 - core index']
  #allocation1 [shape = 'u32[144,128]{1,0:T(1,128)}', space=vmem, size = 0x12000, scoped, tag = 'internal scratch']
  %s0 = inlined_call_operand.vmem [shape: f32[2,8,32], index: 0, kind: input, shape index: {}]
  %s1 = inlined_call_operand.vmem [shape: f32[2,8,32], index: 1, kind: input, shape index: {}]
  %s2 = inlined_call_operand.hbm [shape: f32[2,1,32], index: 2, kind: input, shape index: {}]
  %s3 = inlined_call_operand.hbm [shape: f32[2,1,32], index: 3, kind: input, shape index: {}]
  %s4 = inlined_call_operand.hbm [shape: f32[2,1,32], index: 4, kind: input, shape index: {}]
  %s5 = inlined_call_operand.hbm [shape: f32[2,1,32], index: 5, kind: input, shape index: {}]
  %s6 = inlined_call_operand.hbm [shape: f32[2,1,32], index: 6, kind: input, shape index: {}]
  %s7 = inlined_call_operand.hbm [shape: f32[2,1,32], index: 7, kind: input, shape index: {}]
  %s8 = inlined_call_operand.vmem [shape: f32[1,32], index: 8, kind: input, shape index: {}]
  %s9 = inlined_call_operand.hbm [shape: f32[1,32], index: 9, kind: input, shape index: {}]
  %s10 = inlined_call_operand.vmem [shape: bf16[32,32], index: 10, kind: input, shape index: {}]
  %s11 = inlined_call_operand.vmem [shape: bf16[32,32], index: 11, kind: input, shape index: {}]
  %s12 = inlined_call_operand.vmem [shape: bf16[32,32], index: 12, kind: input, shape index: {}]
  %s13 = inlined_call_operand.hbm [shape: f32[1,16], index: 13, kind: input, shape index: {}]
  %s14 = inlined_call_operand.vmem [shape: f32[1,16], index: 14, kind: input, shape index: {}]
  %s15 = inlined_call_operand.vmem [shape: f32[1,16], index: 15, kind: input, shape index: {}]
  %s16 = inlined_call_operand.vmem [shape: f32[1,16], index: 16, kind: input, shape index: {}]
  %s17 = inlined_call_operand.vmem [shape: bf16[32,32], index: 17, kind: input, shape index: {}]
  %s18 = inlined_call_operand.vmem [shape: f32[1,32], index: 18, kind: input, shape index: {}]
  %s19 = inlined_call_operand.vmem [shape: f32[1,32], index: 19, kind: input, shape index: {}]
  %s20 = inlined_call_operand.vmem [shape: f32[1,32], index: 20, kind: input, shape index: {}]
  %s21 = inlined_call_operand.vmem [shape: bf16[32,128], index: 21, kind: input, shape index: {}]
  %s22 = inlined_call_operand.vmem [shape: f32[1,128], index: 22, kind: input, shape index: {}]
  %s23 = inlined_call_operand.vmem [shape: bf16[128,32], index: 23, kind: input, shape index: {}]
  %s24 = inlined_call_operand.vmem [shape: f32[1,32], index: 24, kind: input, shape index: {}]
  %s25 = inlined_call_operand.hbm [shape: f32[2,8,32], index: 25, kind: output, shape index: {}]
  %s26 = sld [smem:[#allocation0]]
  $region165: #{tpu_custom_call.1} parent=0
    _
  %s28 = ssub.s32 1, %s26
  %s29 = scalar_select 0, %s28, %s26
  $region1: #{tpu_custom_call.1} parent=0
    #allocation2 [shape = 'u8[1024]{0}', space=vmem, size = 0x400, scoped, tag = 'input window, operand 2']
    #allocation3 [shape = 's32[2]{0}', space=sflag, size = 0x8, scoped, tag = 'scoped memory for tpu_custom_call.1']
    #allocation4 [shape = 's32[2]{0}', space=sflag, size = 0x8, scoped, tag = 'scoped memory for tpu_custom_call.1']
    #allocation5 [shape = 'u8[1024]{0}', space=vmem, size = 0x400, scoped, tag = 'input window, operand 3']
    #allocation6 [shape = 's32[2]{0}', space=sflag, size = 0x8, scoped, tag = 'scoped memory for tpu_custom_call.1']
    #allocation7 [shape = 'u8[1024]{0}', space=vmem, size = 0x400, scoped, tag = 'input window, operand 4']
    #allocation8 [shape = 'u8[1024]{0}', space=vmem, size = 0x400, scoped, tag = 'input window, operand 5']
    #allocation9 [shape = 's32[2]{0}', space=sflag, size = 0x8, scoped, tag = 'scoped memory for tpu_custom_call.1']
    #allocation10 [shape = 'u8[1024]{0}', space=vmem, size = 0x400, scoped, tag = 'input window, operand 6']
    #allocation11 [shape = 'u8[1024]{0}', space=vmem, size = 0x400, scoped, tag = 'input window, operand 7']
    #allocation12 [shape = 's32[2]{0}', space=sflag, size = 0x8, scoped, tag = 'scoped memory for tpu_custom_call.1']
    #allocation13 [shape = 'u8[512]{0}', space=vmem, size = 0x400, scoped, tag = 'input window, operand 9, single buffered']
    #allocation14 [shape = 'u8[512]{0}', space=vmem, size = 0x400, scoped, tag = 'input window, operand 13, single buffered']
    #allocation15 [shape = 's32[1]{0}', space=sflag, size = 0x4, scoped, tag = 'scoped memory for tpu_custom_call.1']
    #allocation16 [shape = 'u8[8192]{0}', space=vmem, size = 0x2000, scoped, tag = 'output window, operand 0']
    %30 = vsyncpa [#allocation3], 0
    %s31 = scalar_lea.sflag [#allocation3], 1
    %32 = vsyncpa %s31, 0
    %33 = vsyncpa [#allocation6], 0
    %s34 = scalar_lea.sflag [#allocation6], 1
    %35 = vsyncpa %s34, 0
    %36 = vsyncpa [#allocation9], 0
    %s37 = scalar_lea.sflag [#allocation9], 1
    %38 = vsyncpa %s37, 0
    %39 = vsyncpa [#allocation12], 0
    %s40 = scalar_lea.sflag [#allocation12], 1
    %41 = vsyncpa %s40, 0
    %42 = vsyncpa [#allocation15], 0
    %43 = vsyncpa [#allocation4], 0
    %s44 = scalar_lea.sflag [#allocation4], 1
    %45 = vsyncpa %s44, 0
    loop: start=0, step=1, limit=4
    $region2: #{tpu_custom_call.1} parent=1 // loop_pre_header
      _
    $region3: #{tpu_custom_call.1} parent=1 // loop_header
      %s47 = sphi 0, %s51
      %p48 = scmp.ge.s32.totalorder %s47, 4
      %s54 = sphi 0, %s66
      %s55 = sphi 0, %s62
      %s56 = sphi 0, %s54
      %s57 = sphi 0, %s55
      %s58 = sphi 0, %s56
      %s59 = sphi 0, %s57
      %s71 = sphi 0, %s73
      %s74 = sphi 0, %s71
      %s75 = sphi 0, %s74
      %s91 = sphi 0, %s75
      %s97 = sphi 0, %s99
      %s100 = sphi 0, %s97
      %s101 = sphi 0, %s100
      %s117 = sphi 0, %s101
      %s123 = sphi 0, %s125
      %s126 = sphi 0, %s123
      %s127 = sphi 0, %s126
      %s143 = sphi 0, %s127
      %s149 = sphi 0, %s151
      %s152 = sphi 0, %s149
      %s153 = sphi 0, %s152
      %s169 = sphi 0, %s153
      %s175 = sphi 0, %s177
      %s178 = sphi 0, %s175
      %s179 = sphi 0, %s178
      %s195 = sphi 0, %s179
      %s201 = sphi 0, %s203
      %s204 = sphi 0, %s201
      %s205 = sphi 0, %s204
      %s221 = sphi 0, %s205
      %s227 = sphi 0, %s229
      %s230 = sphi 0, %s227
      %s231 = sphi 0, %s230
      %s247 = sphi 0, %s231
      %s253 = sphi 0, %s255
      %s256 = sphi 0, %s253
      %s257 = sphi 0, %s256
      %s273 = sphi 0, %s257
      %s277 = sphi 0, %s277
      %s279 = sphi 0, %s277
      %s280 = sphi 0, %s279
      %s294 = sphi 0, %s280
      %s298 = sphi 0, %s298
      %s300 = sphi 0, %s298
      %s301 = sphi 0, %s300
      %s315 = sphi 0, %s301
      %s319 = sphi 0, %s319
      %s321 = sphi 0, %s319
      %s322 = sphi 0, %s321
      %s336 = sphi 0, %s322
      %s340 = sphi 0, %s340
      %s342 = sphi 0, %s340
      %s343 = sphi 0, %s342
      %s357 = sphi 0, %s343
      %s361 = sphi 0, %s361
      %s363 = sphi 0, %s361
      %s364 = sphi 0, %s363
      %s378 = sphi 0, %s364
      %s382 = sphi 0, %s382
      %s384 = sphi 0, %s382
      %s385 = sphi 0, %s384
      %s399 = sphi 0, %s385
      %s403 = sphi 0, %s403
      %s405 = sphi 0, %s403
      %s406 = sphi 0, %s405
      %s420 = sphi 0, %s406
      %s424 = sphi 0, %s424
      %s426 = sphi 0, %s424
      %s427 = sphi 0, %s426
      %s441 = sphi 0, %s427
      %s445 = sphi 0, %s445
      %s447 = sphi 0, %s445
      %s448 = sphi 0, %s447
      %s462 = sphi 0, %s448
      %s466 = sphi 0, %s466
      %s468 = sphi 0, %s466
      %s469 = sphi 0, %s468
      %s483 = sphi 0, %s469
      %s487 = sphi 0, %s487
      %s489 = sphi 0, %s487
      %s490 = sphi 0, %s489
      %s504 = sphi 0, %s490
      %s508 = sphi 0, %s508
      %s510 = sphi 0, %s508
      %s511 = sphi 0, %s510
      %s525 = sphi 0, %s511
      %s529 = sphi 0, %s529
      %s531 = sphi 0, %s529
      %s532 = sphi 0, %s531
      %s546 = sphi 0, %s532
      %s550 = sphi 0, %s550
      %s552 = sphi 0, %s550
      %s553 = sphi 0, %s552
      %s567 = sphi 0, %s553
      %s571 = sphi 0, %s571
      %s573 = sphi 0, %s571
      %s574 = sphi 0, %s573
      %s588 = sphi 0, %s574
      %s592 = sphi 0, %s592
      %s594 = sphi 0, %s592
      %s595 = sphi 0, %s594
      %s609 = sphi 0, %s595
      %s613 = sphi 0, %s613
      %s615 = sphi 0, %s613
      %s616 = sphi 0, %s615
      %s630 = sphi 0, %s616
      %s638 = sphi 0, %s640
      %s641 = sphi 0, %s638
      %s642 = sphi 0, %s641
      %s658 = sphi 0, %s642
    $region4: #{tpu_custom_call.1} parent=1 // loop_header_branch
      %50 = sbr.rel (%p48) target = $region8
    $region5: #{tpu_custom_call.1} parent=1 // loop_body
      %s52 = ssub.s32 %s47, 1
      %s53 = ssub.s32 %s47, 2
      %s60 = sadd.s32 1, %s55
      %p61 = scmp.ge.s32.totalorder %s60, 1
      %s62 = scalar_select %p61, 0, %s60
      %s63 = sadd.s32 1, %s54
      %s64 = scalar_select %p61, %s63, %s54
      %p65 = scmp.ge.s32.totalorder %s64, 2
      %s66 = scalar_select %p65, 0, %s64
      %s67 = ssub.s32 %s54, %s66
      %s68 = ssub.s32 %s55, %s62
      %s69 = sor.u32 %s67, %s68
      %p70 = scmp.eq.s32.totalorder %s69, 0
      %s72 = sadd.s32 %s71, 1
      %s73 = scalar_select %p70, %s71, %s72
      %p76 = pneg %p70
      %p77 = scmp.eq.s32.totalorder %s47, 1
      %p78 = por %p76, %p77
      %p79 = scmp.ne.s32.totalorder %s71, %s74
      %p80 = scmp.eq.s32.totalorder %s47, 0
      %p81 = por %p79, %p80
      %p82 = scmp.ne.s32.totalorder %s71, %s74
      %p83 = scmp.eq.s32.totalorder %s52, 1
      %p84 = por %p82, %p83
      %p85 = scmp.ne.s32.totalorder %s74, %s75
      %p86 = scmp.eq.s32.totalorder %s52, 0
      %p87 = por %p85, %p86
      %p88 = scmp.ne.s32.totalorder %s74, %s75
      %p89 = scmp.eq.s32.totalorder %s53, 1
      %p90 = por %p88, %p89
      %p92 = scmp.ne.s32.totalorder %s75, %s91
      %p93 = scmp.eq.s32.totalorder %s53, 0
      %p94 = por %p92, %p93
      %s95 = ssub.s32 %s54, %s66
      %p96 = scmp.eq.s32.totalorder %s95, 0
      %s98 = sadd.s32 %s97, 1
      %s99 = scalar_select %p96, %s97, %s98
      %p102 = pneg %p96
      %p103 = scmp.eq.s32.totalorder %s47, 1
      %p104 = por %p102, %p103
      %p105 = scmp.ne.s32.totalorder %s97, %s100
      %p106 = scmp.eq.s32.totalorder %s47, 0
      %p107 = por %p105, %p106
      %p108 = scmp.ne.s32.totalorder %s97, %s100
      %p109 = scmp.eq.s32.totalorder %s52, 1
      %p110 = por %p108, %p109
      %p111 = scmp.ne.s32.totalorder %s100, %s101
      %p112 = scmp.eq.s32.totalorder %s52, 0
      %p113 = por %p111, %p112
      %p114 = scmp.ne.s32.totalorder %s100, %s101
      %p115 = scmp.eq.s32.totalorder %s53, 1
      %p116 = por %p114, %p115
      %p118 = scmp.ne.s32.totalorder %s101, %s117
      %p119 = scmp.eq.s32.totalorder %s53, 0
      %p120 = por %p118, %p119
      %s121 = ssub.s32 %s54, %s66
      %p122 = scmp.eq.s32.totalorder %s121, 0
      %s124 = sadd.s32 %s123, 1
      %s125 = scalar_select %p122, %s123, %s124
      %p128 = pneg %p122
      %p129 = scmp.eq.s32.totalorder %s47, 1
      %p130 = por %p128, %p129
      %p131 = scmp.ne.s32.totalorder %s123, %s126
      %p132 = scmp.eq.s32.totalorder %s47, 0
      %p133 = por %p131, %p132
      %p134 = scmp.ne.s32.totalorder %s123, %s126
      %p135 = scmp.eq.s32.totalorder %s52, 1
      %p136 = por %p134, %p135
      %p137 = scmp.ne.s32.totalorder %s126, %s127
      %p138 = scmp.eq.s32.totalorder %s52, 0
      %p139 = por %p137, %p138
      %p140 = scmp.ne.s32.totalorder %s126, %s127
      %p141 = scmp.eq.s32.totalorder %s53, 1
      %p142 = por %p140, %p141
      %p144 = scmp.ne.s32.totalorder %s127, %s143
      %p145 = scmp.eq.s32.totalorder %s53, 0
      %p146 = por %p144, %p145
      %s147 = ssub.s32 %s54, %s66
      %p148 = scmp.eq.s32.totalorder %s147, 0
      %s150 = sadd.s32 %s149, 1
      %s151 = scalar_select %p148, %s149, %s150
      %p154 = pneg %p148
      %p155 = scmp.eq.s32.totalorder %s47, 1
      %p156 = por %p154, %p155
      %p157 = scmp.ne.s32.totalorder %s149, %s152
      %p158 = scmp.eq.s32.totalorder %s47, 0
      %p159 = por %p157, %p158
      %p160 = scmp.ne.s32.totalorder %s149, %s152
      %p161 = scmp.eq.s32.totalorder %s52, 1
      %p162 = por %p160, %p161
      %p163 = scmp.ne.s32.totalorder %s152, %s153
      %p164 = scmp.eq.s32.totalorder %s52, 0
      %p165 = por %p163, %p164
      %p166 = scmp.ne.s32.totalorder %s152, %s153
      %p167 = scmp.eq.s32.totalorder %s53, 1
      %p168 = por %p166, %p167
      %p170 = scmp.ne.s32.totalorder %s153, %s169
      %p171 = scmp.eq.s32.totalorder %s53, 0
      %p172 = por %p170, %p171
      %s173 = ssub.s32 %s54, %s66
      %p174 = scmp.eq.s32.totalorder %s173, 0
      %s176 = sadd.s32 %s175, 1
      %s177 = scalar_select %p174, %s175, %s176
      %p180 = pneg %p174
      %p181 = scmp.eq.s32.totalorder %s47, 1
      %p182 = por %p180, %p181
      %p183 = scmp.ne.s32.totalorder %s175, %s178
      %p184 = scmp.eq.s32.totalorder %s47, 0
      %p185 = por %p183, %p184
      %p186 = scmp.ne.s32.totalorder %s175, %s178
      %p187 = scmp.eq.s32.totalorder %s52, 1
      %p188 = por %p186, %p187
      %p189 = scmp.ne.s32.totalorder %s178, %s179
      %p190 = scmp.eq.s32.totalorder %s52, 0
      %p191 = por %p189, %p190
      %p192 = scmp.ne.s32.totalorder %s178, %s179
      %p193 = scmp.eq.s32.totalorder %s53, 1
      %p194 = por %p192, %p193
      %p196 = scmp.ne.s32.totalorder %s179, %s195
      %p197 = scmp.eq.s32.totalorder %s53, 0
      %p198 = por %p196, %p197
      %s199 = ssub.s32 %s54, %s66
      %p200 = scmp.eq.s32.totalorder %s199, 0
      %s202 = sadd.s32 %s201, 1
      %s203 = scalar_select %p200, %s201, %s202
      %p206 = pneg %p200
      %p207 = scmp.eq.s32.totalorder %s47, 1
      %p208 = por %p206, %p207
      %p209 = scmp.ne.s32.totalorder %s201, %s204
      %p210 = scmp.eq.s32.totalorder %s47, 0
      %p211 = por %p209, %p210
      %p212 = scmp.ne.s32.totalorder %s201, %s204
      %p213 = scmp.eq.s32.totalorder %s52, 1
      %p214 = por %p212, %p213
      %p215 = scmp.ne.s32.totalorder %s204, %s205
      %p216 = scmp.eq.s32.totalorder %s52, 0
      %p217 = por %p215, %p216
      %p218 = scmp.ne.s32.totalorder %s204, %s205
      %p219 = scmp.eq.s32.totalorder %s53, 1
      %p220 = por %p218, %p219
      %p222 = scmp.ne.s32.totalorder %s205, %s221
      %p223 = scmp.eq.s32.totalorder %s53, 0
      %p224 = por %p222, %p223
      %s225 = ssub.s32 %s54, %s66
      %p226 = scmp.eq.s32.totalorder %s225, 0
      %s228 = sadd.s32 %s227, 1
      %s229 = scalar_select %p226, %s227, %s228
      %p232 = pneg %p226
      %p233 = scmp.eq.s32.totalorder %s47, 1
      %p234 = por %p232, %p233
      %p235 = scmp.ne.s32.totalorder %s227, %s230
      %p236 = scmp.eq.s32.totalorder %s47, 0
      %p237 = por %p235, %p236
      %p238 = scmp.ne.s32.totalorder %s227, %s230
      %p239 = scmp.eq.s32.totalorder %s52, 1
      %p240 = por %p238, %p239
      %p241 = scmp.ne.s32.totalorder %s230, %s231
      %p242 = scmp.eq.s32.totalorder %s52, 0
      %p243 = por %p241, %p242
      %p244 = scmp.ne.s32.totalorder %s230, %s231
      %p245 = scmp.eq.s32.totalorder %s53, 1
      %p246 = por %p244, %p245
      %p248 = scmp.ne.s32.totalorder %s231, %s247
      %p249 = scmp.eq.s32.totalorder %s53, 0
      %p250 = por %p248, %p249
      %s251 = ssub.s32 %s54, %s66
      %p252 = scmp.eq.s32.totalorder %s251, 0
      %s254 = sadd.s32 %s253, 1
      %s255 = scalar_select %p252, %s253, %s254
      %p258 = pneg %p252
      %p259 = scmp.eq.s32.totalorder %s47, 1
      %p260 = por %p258, %p259
      %p261 = scmp.ne.s32.totalorder %s253, %s256
      %p262 = scmp.eq.s32.totalorder %s47, 0
      %p263 = por %p261, %p262
      %p264 = scmp.ne.s32.totalorder %s253, %s256
      %p265 = scmp.eq.s32.totalorder %s52, 1
      %p266 = por %p264, %p265
      %p267 = scmp.ne.s32.totalorder %s256, %s257
      %p268 = scmp.eq.s32.totalorder %s52, 0
      %p269 = por %p267, %p268
      %p270 = scmp.ne.s32.totalorder %s256, %s257
      %p271 = scmp.eq.s32.totalorder %s53, 1
      %p272 = por %p270, %p271
      %p274 = scmp.ne.s32.totalorder %s257, %s273
      %p275 = scmp.eq.s32.totalorder %s53, 0
      %p276 = por %p274, %p275
      %s278 = sadd.s32 %s277, 1
      %p281 = scmp.eq.s32.totalorder %s47, 1
      %p282 = scmp.ne.s32.totalorder %s277, %s279
      %p283 = scmp.eq.s32.totalorder %s47, 0
      %p284 = por %p282, %p283
      %p285 = scmp.ne.s32.totalorder %s277, %s279
      %p286 = scmp.eq.s32.totalorder %s52, 1
      %p287 = por %p285, %p286
      %p288 = scmp.ne.s32.totalorder %s279, %s280
      %p289 = scmp.eq.s32.totalorder %s52, 0
      %p290 = por %p288, %p289
      %p291 = scmp.ne.s32.totalorder %s279, %s280
      %p292 = scmp.eq.s32.totalorder %s53, 1
      %p293 = por %p291, %p292
      %p295 = scmp.ne.s32.totalorder %s280, %s294
      %p296 = scmp.eq.s32.totalorder %s53, 0
      %p297 = por %p295, %p296
      %s299 = sadd.s32 %s298, 1
      %p302 = scmp.eq.s32.totalorder %s47, 1
      %p303 = scmp.ne.s32.totalorder %s298, %s300
      %p304 = scmp.eq.s32.totalorder %s47, 0
      %p305 = por %p303, %p304
      %p306 = scmp.ne.s32.totalorder %s298, %s300
      %p307 = scmp.eq.s32.totalorder %s52, 1
      %p308 = por %p306, %p307
      %p309 = scmp.ne.s32.totalorder %s300, %s301
      %p310 = scmp.eq.s32.totalorder %s52, 0
      %p311 = por %p309, %p310
      %p312 = scmp.ne.s32.totalorder %s300, %s301
      %p313 = scmp.eq.s32.totalorder %s53, 1
      %p314 = por %p312, %p313
      %p316 = scmp.ne.s32.totalorder %s301, %s315
      %p317 = scmp.eq.s32.totalorder %s53, 0
      %p318 = por %p316, %p317
      %s320 = sadd.s32 %s319, 1
      %p323 = scmp.eq.s32.totalorder %s47, 1
      %p324 = scmp.ne.s32.totalorder %s319, %s321
      %p325 = scmp.eq.s32.totalorder %s47, 0
      %p326 = por %p324, %p325
      %p327 = scmp.ne.s32.totalorder %s319, %s321
      %p328 = scmp.eq.s32.totalorder %s52, 1
      %p329 = por %p327, %p328
      %p330 = scmp.ne.s32.totalorder %s321, %s322
      %p331 = scmp.eq.s32.totalorder %s52, 0
      %p332 = por %p330, %p331
      %p333 = scmp.ne.s32.totalorder %s321, %s322
      %p334 = scmp.eq.s32.totalorder %s53, 1
      %p335 = por %p333, %p334
      %p337 = scmp.ne.s32.totalorder %s322, %s336
      %p338 = scmp.eq.s32.totalorder %s53, 0
      %p339 = por %p337, %p338
      %s341 = sadd.s32 %s340, 1
      %p344 = scmp.eq.s32.totalorder %s47, 1
      %p345 = scmp.ne.s32.totalorder %s340, %s342
      %p346 = scmp.eq.s32.totalorder %s47, 0
      %p347 = por %p345, %p346
      %p348 = scmp.ne.s32.totalorder %s340, %s342
      %p349 = scmp.eq.s32.totalorder %s52, 1
      %p350 = por %p348, %p349
      %p351 = scmp.ne.s32.totalorder %s342, %s343
      %p352 = scmp.eq.s32.totalorder %s52, 0
      %p353 = por %p351, %p352
      %p354 = scmp.ne.s32.totalorder %s342, %s343
      %p355 = scmp.eq.s32.totalorder %s53, 1
      %p356 = por %p354, %p355
      %p358 = scmp.ne.s32.totalorder %s343, %s357
      %p359 = scmp.eq.s32.totalorder %s53, 0
      %p360 = por %p358, %p359
      %s362 = sadd.s32 %s361, 1
      %p365 = scmp.eq.s32.totalorder %s47, 1
      %p366 = scmp.ne.s32.totalorder %s361, %s363
      %p367 = scmp.eq.s32.totalorder %s47, 0
      %p368 = por %p366, %p367
      %p369 = scmp.ne.s32.totalorder %s361, %s363
      %p370 = scmp.eq.s32.totalorder %s52, 1
      %p371 = por %p369, %p370
      %p372 = scmp.ne.s32.totalorder %s363, %s364
      %p373 = scmp.eq.s32.totalorder %s52, 0
      %p374 = por %p372, %p373
      %p375 = scmp.ne.s32.totalorder %s363, %s364
      %p376 = scmp.eq.s32.totalorder %s53, 1
      %p377 = por %p375, %p376
      %p379 = scmp.ne.s32.totalorder %s364, %s378
      %p380 = scmp.eq.s32.totalorder %s53, 0
      %p381 = por %p379, %p380
      %s383 = sadd.s32 %s382, 1
      %p386 = scmp.eq.s32.totalorder %s47, 1
      %p387 = scmp.ne.s32.totalorder %s382, %s384
      %p388 = scmp.eq.s32.totalorder %s47, 0
      %p389 = por %p387, %p388
      %p390 = scmp.ne.s32.totalorder %s382, %s384
      %p391 = scmp.eq.s32.totalorder %s52, 1
      %p392 = por %p390, %p391
      %p393 = scmp.ne.s32.totalorder %s384, %s385
      %p394 = scmp.eq.s32.totalorder %s52, 0
      %p395 = por %p393, %p394
      %p396 = scmp.ne.s32.totalorder %s384, %s385
      %p397 = scmp.eq.s32.totalorder %s53, 1
      %p398 = por %p396, %p397
      %p400 = scmp.ne.s32.totalorder %s385, %s399
      %p401 = scmp.eq.s32.totalorder %s53, 0
      %p402 = por %p400, %p401
      %s404 = sadd.s32 %s403, 1
      %p407 = scmp.eq.s32.totalorder %s47, 1
      %p408 = scmp.ne.s32.totalorder %s403, %s405
      %p409 = scmp.eq.s32.totalorder %s47, 0
      %p410 = por %p408, %p409
      %p411 = scmp.ne.s32.totalorder %s403, %s405
      %p412 = scmp.eq.s32.totalorder %s52, 1
      %p413 = por %p411, %p412
      %p414 = scmp.ne.s32.totalorder %s405, %s406
      %p415 = scmp.eq.s32.totalorder %s52, 0
      %p416 = por %p414, %p415
      %p417 = scmp.ne.s32.totalorder %s405, %s406
      %p418 = scmp.eq.s32.totalorder %s53, 1
      %p419 = por %p417, %p418
      %p421 = scmp.ne.s32.totalorder %s406, %s420
      %p422 = scmp.eq.s32.totalorder %s53, 0
      %p423 = por %p421, %p422
      %s425 = sadd.s32 %s424, 1
      %p428 = scmp.eq.s32.totalorder %s47, 1
      %p429 = scmp.ne.s32.totalorder %s424, %s426
      %p430 = scmp.eq.s32.totalorder %s47, 0
      %p431 = por %p429, %p430
      %p432 = scmp.ne.s32.totalorder %s424, %s426
      %p433 = scmp.eq.s32.totalorder %s52, 1
      %p434 = por %p432, %p433
      %p435 = scmp.ne.s32.totalorder %s426, %s427
      %p436 = scmp.eq.s32.totalorder %s52, 0
      %p437 = por %p435, %p436
      %p438 = scmp.ne.s32.totalorder %s426, %s427
      %p439 = scmp.eq.s32.totalorder %s53, 1
      %p440 = por %p438, %p439
      %p442 = scmp.ne.s32.totalorder %s427, %s441
      %p443 = scmp.eq.s32.totalorder %s53, 0
      %p444 = por %p442, %p443
      %s446 = sadd.s32 %s445, 1
      %p449 = scmp.eq.s32.totalorder %s47, 1
      %p450 = scmp.ne.s32.totalorder %s445, %s447
      %p451 = scmp.eq.s32.totalorder %s47, 0
      %p452 = por %p450, %p451
      %p453 = scmp.ne.s32.totalorder %s445, %s447
      %p454 = scmp.eq.s32.totalorder %s52, 1
      %p455 = por %p453, %p454
      %p456 = scmp.ne.s32.totalorder %s447, %s448
      %p457 = scmp.eq.s32.totalorder %s52, 0
      %p458 = por %p456, %p457
      %p459 = scmp.ne.s32.totalorder %s447, %s448
      %p460 = scmp.eq.s32.totalorder %s53, 1
      %p461 = por %p459, %p460
      %p463 = scmp.ne.s32.totalorder %s448, %s462
      %p464 = scmp.eq.s32.totalorder %s53, 0
      %p465 = por %p463, %p464
      %s467 = sadd.s32 %s466, 1
      %p470 = scmp.eq.s32.totalorder %s47, 1
      %p471 = scmp.ne.s32.totalorder %s466, %s468
      %p472 = scmp.eq.s32.totalorder %s47, 0
      %p473 = por %p471, %p472
      %p474 = scmp.ne.s32.totalorder %s466, %s468
      %p475 = scmp.eq.s32.totalorder %s52, 1
      %p476 = por %p474, %p475
      %p477 = scmp.ne.s32.totalorder %s468, %s469
      %p478 = scmp.eq.s32.totalorder %s52, 0
      %p479 = por %p477, %p478
      %p480 = scmp.ne.s32.totalorder %s468, %s469
      %p481 = scmp.eq.s32.totalorder %s53, 1
      %p482 = por %p480, %p481
      %p484 = scmp.ne.s32.totalorder %s469, %s483
      %p485 = scmp.eq.s32.totalorder %s53, 0
      %p486 = por %p484, %p485
      %s488 = sadd.s32 %s487, 1
      %p491 = scmp.eq.s32.totalorder %s47, 1
      %p492 = scmp.ne.s32.totalorder %s487, %s489
      %p493 = scmp.eq.s32.totalorder %s47, 0
      %p494 = por %p492, %p493
      %p495 = scmp.ne.s32.totalorder %s487, %s489
      %p496 = scmp.eq.s32.totalorder %s52, 1
      %p497 = por %p495, %p496
      %p498 = scmp.ne.s32.totalorder %s489, %s490
      %p499 = scmp.eq.s32.totalorder %s52, 0
      %p500 = por %p498, %p499
      %p501 = scmp.ne.s32.totalorder %s489, %s490
      %p502 = scmp.eq.s32.totalorder %s53, 1
      %p503 = por %p501, %p502
      %p505 = scmp.ne.s32.totalorder %s490, %s504
      %p506 = scmp.eq.s32.totalorder %s53, 0
      %p507 = por %p505, %p506
      %s509 = sadd.s32 %s508, 1
      %p512 = scmp.eq.s32.totalorder %s47, 1
      %p513 = scmp.ne.s32.totalorder %s508, %s510
      %p514 = scmp.eq.s32.totalorder %s47, 0
      %p515 = por %p513, %p514
      %p516 = scmp.ne.s32.totalorder %s508, %s510
      %p517 = scmp.eq.s32.totalorder %s52, 1
      %p518 = por %p516, %p517
      %p519 = scmp.ne.s32.totalorder %s510, %s511
      %p520 = scmp.eq.s32.totalorder %s52, 0
      %p521 = por %p519, %p520
      %p522 = scmp.ne.s32.totalorder %s510, %s511
      %p523 = scmp.eq.s32.totalorder %s53, 1
      %p524 = por %p522, %p523
      %p526 = scmp.ne.s32.totalorder %s511, %s525
      %p527 = scmp.eq.s32.totalorder %s53, 0
      %p528 = por %p526, %p527
      %s530 = sadd.s32 %s529, 1
      %p533 = scmp.eq.s32.totalorder %s47, 1
      %p534 = scmp.ne.s32.totalorder %s529, %s531
      %p535 = scmp.eq.s32.totalorder %s47, 0
      %p536 = por %p534, %p535
      %p537 = scmp.ne.s32.totalorder %s529, %s531
      %p538 = scmp.eq.s32.totalorder %s52, 1
      %p539 = por %p537, %p538
      %p540 = scmp.ne.s32.totalorder %s531, %s532
      %p541 = scmp.eq.s32.totalorder %s52, 0
      %p542 = por %p540, %p541
      %p543 = scmp.ne.s32.totalorder %s531, %s532
      %p544 = scmp.eq.s32.totalorder %s53, 1
      %p545 = por %p543, %p544
      %p547 = scmp.ne.s32.totalorder %s532, %s546
      %p548 = scmp.eq.s32.totalorder %s53, 0
      %p549 = por %p547, %p548
      %s551 = sadd.s32 %s550, 1
      %p554 = scmp.eq.s32.totalorder %s47, 1
      %p555 = scmp.ne.s32.totalorder %s550, %s552
      %p556 = scmp.eq.s32.totalorder %s47, 0
      %p557 = por %p555, %p556
      %p558 = scmp.ne.s32.totalorder %s550, %s552
      %p559 = scmp.eq.s32.totalorder %s52, 1
      %p560 = por %p558, %p559
      %p561 = scmp.ne.s32.totalorder %s552, %s553
      %p562 = scmp.eq.s32.totalorder %s52, 0
      %p563 = por %p561, %p562
      %p564 = scmp.ne.s32.totalorder %s552, %s553
      %p565 = scmp.eq.s32.totalorder %s53, 1
      %p566 = por %p564, %p565
      %p568 = scmp.ne.s32.totalorder %s553, %s567
      %p569 = scmp.eq.s32.totalorder %s53, 0
      %p570 = por %p568, %p569
      %s572 = sadd.s32 %s571, 1
      %p575 = scmp.eq.s32.totalorder %s47, 1
      %p576 = scmp.ne.s32.totalorder %s571, %s573
      %p577 = scmp.eq.s32.totalorder %s47, 0
      %p578 = por %p576, %p577
      %p579 = scmp.ne.s32.totalorder %s571, %s573
      %p580 = scmp.eq.s32.totalorder %s52, 1
      %p581 = por %p579, %p580
      %p582 = scmp.ne.s32.totalorder %s573, %s574
      %p583 = scmp.eq.s32.totalorder %s52, 0
      %p584 = por %p582, %p583
      %p585 = scmp.ne.s32.totalorder %s573, %s574
      %p586 = scmp.eq.s32.totalorder %s53, 1
      %p587 = por %p585, %p586
      %p589 = scmp.ne.s32.totalorder %s574, %s588
      %p590 = scmp.eq.s32.totalorder %s53, 0
      %p591 = por %p589, %p590
      %s593 = sadd.s32 %s592, 1
      %p596 = scmp.eq.s32.totalorder %s47, 1
      %p597 = scmp.ne.s32.totalorder %s592, %s594
      %p598 = scmp.eq.s32.totalorder %s47, 0
      %p599 = por %p597, %p598
      %p600 = scmp.ne.s32.totalorder %s592, %s594
      %p601 = scmp.eq.s32.totalorder %s52, 1
      %p602 = por %p600, %p601
      %p603 = scmp.ne.s32.totalorder %s594, %s595
      %p604 = scmp.eq.s32.totalorder %s52, 0
      %p605 = por %p603, %p604
      %p606 = scmp.ne.s32.totalorder %s594, %s595
      %p607 = scmp.eq.s32.totalorder %s53, 1
      %p608 = por %p606, %p607
      %p610 = scmp.ne.s32.totalorder %s595, %s609
      %p611 = scmp.eq.s32.totalorder %s53, 0
      %p612 = por %p610, %p611
      %s614 = sadd.s32 %s613, 1
      %p617 = scmp.eq.s32.totalorder %s47, 1
      %p618 = scmp.ne.s32.totalorder %s613, %s615
      %p619 = scmp.eq.s32.totalorder %s47, 0
      %p620 = por %p618, %p619
      %p621 = scmp.ne.s32.totalorder %s613, %s615
      %p622 = scmp.eq.s32.totalorder %s52, 1
      %p623 = por %p621, %p622
      %p624 = scmp.ne.s32.totalorder %s615, %s616
      %p625 = scmp.eq.s32.totalorder %s52, 0
      %p626 = por %p624, %p625
      %p627 = scmp.ne.s32.totalorder %s615, %s616
      %p628 = scmp.eq.s32.totalorder %s53, 1
      %p629 = por %p627, %p628
      %p631 = scmp.ne.s32.totalorder %s616, %s630
      %p632 = scmp.eq.s32.totalorder %s53, 0
      %p633 = por %p631, %p632
      %s634 = ssub.s32 %s54, %s66
      %s635 = ssub.s32 %s55, %s62
      %s636 = sor.u32 %s634, %s635
      %p637 = scmp.eq.s32.totalorder %s636, 0
      %s639 = sadd.s32 %s638, 1
      %s640 = scalar_select %p637, %s638, %s639
      %p643 = pneg %p637
      %p644 = scmp.eq.s32.totalorder %s47, 1
      %p645 = por %p643, %p644
      %p646 = scmp.ne.s32.totalorder %s638, %s641
      %p647 = scmp.eq.s32.totalorder %s47, 0
      %p648 = por %p646, %p647
      %p649 = scmp.ne.s32.totalorder %s638, %s641
      %p650 = scmp.eq.s32.totalorder %s52, 1
      %p651 = por %p649, %p650
      %p652 = scmp.ne.s32.totalorder %s641, %s642
      %p653 = scmp.eq.s32.totalorder %s52, 0
      %p654 = por %p652, %p653
      %p655 = scmp.ne.s32.totalorder %s641, %s642
      %p656 = scmp.eq.s32.totalorder %s53, 1
      %p657 = por %p655, %p656
      %p659 = scmp.ne.s32.totalorder %s642, %s658
      %p660 = scmp.eq.s32.totalorder %s53, 0
      %p661 = por %p659, %p660
      %p662 = scmp.le.s32.totalorder 1, %s47
      %p663 = scmp.lt.s32.totalorder %s47, 3
      %p664 = pnand %p662, %p663
      %p665 = pneg %p664
      // Predicated region
      $region9: #{tpu_custom_call.1} parent=5 // pred_check
        _
      $region10: #{tpu_custom_call.1} parent=5 // pred_check_branch
        %667 = sbr.rel (%p664) target = $region12
      $region11: #{tpu_custom_call.1} parent=5 // pred_region
        %s668 = ssub.s32 %s47, 1
        // Predicated region
        $region13: #{tpu_custom_call.1} parent=11 // pred_check
          %p669 = pneg %p290
        $region14: #{tpu_custom_call.1} parent=11 // pred_check_branch
          %671 = sbr.rel (%p669) target = $region16
        $region15: #{tpu_custom_call.1} parent=11 // pred_region
          _
        $region16: #{tpu_custom_call.1} parent=11 // pred_fallthru
          _
        // Predicated region
        $region17: #{tpu_custom_call.1} parent=11 // pred_check
          %p672 = pneg %p311
        $region18: #{tpu_custom_call.1} parent=11 // pred_check_branch
          %674 = sbr.rel (%p672) target = $region20
        $region19: #{tpu_custom_call.1} parent=11 // pred_region
          %s676 = ssub.s32 16, 16
          %677 = vsyncadd [#allocation12], %s676
          %s679 = sshll.u32 [#allocation13], 4
          %s680 = int_to_ptr.vmem [resolvable:$true] %s679
          %682 = dma.hbm_to_vmem [thread:$0]  %s9, 16, %s680, [#allocation12]
        $region20: #{tpu_custom_call.1} parent=11 // pred_fallthru
          _
        // Predicated region
        $region21: #{tpu_custom_call.1} parent=11 // pred_check
          %p683 = pneg %p332
        $region22: #{tpu_custom_call.1} parent=11 // pred_check_branch
          %685 = sbr.rel (%p683) target = $region24
        $region23: #{tpu_custom_call.1} parent=11 // pred_region
          _
        $region24: #{tpu_custom_call.1} parent=11 // pred_fallthru
          _
        // Predicated region
        $region25: #{tpu_custom_call.1} parent=11 // pred_check
          %p686 = pneg %p353
        $region26: #{tpu_custom_call.1} parent=11 // pred_check_branch
          %688 = sbr.rel (%p686) target = $region28
        $region27: #{tpu_custom_call.1} parent=11 // pred_region
          _
        $region28: #{tpu_custom_call.1} parent=11 // pred_fallthru
          _
        // Predicated region
        $region29: #{tpu_custom_call.1} parent=11 // pred_check
          %p689 = pneg %p374
        $region30: #{tpu_custom_call.1} parent=11 // pred_check_branch
          %691 = sbr.rel (%p689) target = $region32
        $region31: #{tpu_custom_call.1} parent=11 // pred_region
          _
        $region32: #{tpu_custom_call.1} parent=11 // pred_fallthru
          _
        // Predicated region
        $region33: #{tpu_custom_call.1} parent=11 // pred_check
          %p692 = pneg %p395
        $region34: #{tpu_custom_call.1} parent=11 // pred_check_branch
          %694 = sbr.rel (%p692) target = $region36
        $region35: #{tpu_custom_call.1} parent=11 // pred_region
          %s696 = ssub.s32 16, 16
          %697 = vsyncadd [#allocation15], %s696
          %s699 = sshll.u32 [#allocation14], 4
          %s700 = int_to_ptr.vmem [resolvable:$true] %s699
          %702 = dma.hbm_to_vmem [thread:$0]  %s13, 16, %s700, [#allocation15]
        $region36: #{tpu_custom_call.1} parent=11 // pred_fallthru
          _
        // Predicated region
        $region37: #{tpu_custom_call.1} parent=11 // pred_check
          %p703 = pneg %p416
        $region38: #{tpu_custom_call.1} parent=11 // pred_check_branch
          %705 = sbr.rel (%p703) target = $region40
        $region39: #{tpu_custom_call.1} parent=11 // pred_region
          _
        $region40: #{tpu_custom_call.1} parent=11 // pred_fallthru
          _
        // Predicated region
        $region41: #{tpu_custom_call.1} parent=11 // pred_check
          %p706 = pneg %p437
        $region42: #{tpu_custom_call.1} parent=11 // pred_check_branch
          %708 = sbr.rel (%p706) target = $region44
        $region43: #{tpu_custom_call.1} parent=11 // pred_region
          _
        $region44: #{tpu_custom_call.1} parent=11 // pred_fallthru
          _
        // Predicated region
        $region45: #{tpu_custom_call.1} parent=11 // pred_check
          %p709 = pneg %p458
        $region46: #{tpu_custom_call.1} parent=11 // pred_check_branch
          %711 = sbr.rel (%p709) target = $region48
        $region47: #{tpu_custom_call.1} parent=11 // pred_region
          _
        $region48: #{tpu_custom_call.1} parent=11 // pred_fallthru
          _
        // Predicated region
        $region49: #{tpu_custom_call.1} parent=11 // pred_check
          %p712 = pneg %p479
        $region50: #{tpu_custom_call.1} parent=11 // pred_check_branch
          %714 = sbr.rel (%p712) target = $region52
        $region51: #{tpu_custom_call.1} parent=11 // pred_region
          _
        $region52: #{tpu_custom_call.1} parent=11 // pred_fallthru
          _
        // Predicated region
        $region53: #{tpu_custom_call.1} parent=11 // pred_check
          %p715 = pneg %p500
        $region54: #{tpu_custom_call.1} parent=11 // pred_check_branch
          %717 = sbr.rel (%p715) target = $region56
        $region55: #{tpu_custom_call.1} parent=11 // pred_region
          _
        $region56: #{tpu_custom_call.1} parent=11 // pred_fallthru
          _
        // Predicated region
        $region57: #{tpu_custom_call.1} parent=11 // pred_check
          %p718 = pneg %p521
        $region58: #{tpu_custom_call.1} parent=11 // pred_check_branch
          %720 = sbr.rel (%p718) target = $region60
        $region59: #{tpu_custom_call.1} parent=11 // pred_region
          _
        $region60: #{tpu_custom_call.1} parent=11 // pred_fallthru
          _
        // Predicated region
        $region61: #{tpu_custom_call.1} parent=11 // pred_check
          %p721 = pneg %p542
        $region62: #{tpu_custom_call.1} parent=11 // pred_check_branch
          %723 = sbr.rel (%p721) target = $region64
        $region63: #{tpu_custom_call.1} parent=11 // pred_region
          _
        $region64: #{tpu_custom_call.1} parent=11 // pred_fallthru
          _
        // Predicated region
        $region65: #{tpu_custom_call.1} parent=11 // pred_check
          %p724 = pneg %p563
        $region66: #{tpu_custom_call.1} parent=11 // pred_check_branch
          %726 = sbr.rel (%p724) target = $region68
        $region67: #{tpu_custom_call.1} parent=11 // pred_region
          _
        $region68: #{tpu_custom_call.1} parent=11 // pred_fallthru
          _
        // Predicated region
        $region69: #{tpu_custom_call.1} parent=11 // pred_check
          %p727 = pneg %p584
        $region70: #{tpu_custom_call.1} parent=11 // pred_check_branch
          %729 = sbr.rel (%p727) target = $region72
        $region71: #{tpu_custom_call.1} parent=11 // pred_region
          _
        $region72: #{tpu_custom_call.1} parent=11 // pred_fallthru
          _
        // Predicated region
        $region73: #{tpu_custom_call.1} parent=11 // pred_check
          %p730 = pneg %p605
        $region74: #{tpu_custom_call.1} parent=11 // pred_check_branch
          %732 = sbr.rel (%p730) target = $region76
        $region75: #{tpu_custom_call.1} parent=11 // pred_region
          _
        $region76: #{tpu_custom_call.1} parent=11 // pred_fallthru
          _
        // Predicated region
        $region77: #{tpu_custom_call.1} parent=11 // pred_check
          %p733 = pneg %p626
        $region78: #{tpu_custom_call.1} parent=11 // pred_check_branch
          %735 = sbr.rel (%p733) target = $region80
        $region79: #{tpu_custom_call.1} parent=11 // pred_region
          _
        $region80: #{tpu_custom_call.1} parent=11 // pred_fallthru
          _
      $region12: #{tpu_custom_call.1} parent=5 // pred_fallthru
        _
      %p736 = scmp.lt.s32.totalorder %s47, 2
      // Predicated region
      $region81: #{tpu_custom_call.1} parent=5 // pred_check
        %p737 = pneg %p736
      $region82: #{tpu_custom_call.1} parent=5 // pred_check_branch
        %739 = sbr.rel (%p737) target = $region84
      $region83: #{tpu_custom_call.1} parent=5 // pred_region
        // Predicated region
        $region85: #{tpu_custom_call.1} parent=83 // pred_check
          %p740 = pneg %p81
        $region86: #{tpu_custom_call.1} parent=83 // pred_check_branch
          %742 = sbr.rel (%p740) target = $region88
        $region87: #{tpu_custom_call.1} parent=83 // pred_region
          %p743 = scmp.lt.s32.totalorder %s54, 1
          %s744 = scalar_select %p743, %s54, 1
          %p745 = scmp.lt.s32.totalorder %s55, 0
          %s746 = scalar_select %p745, %s55, 0
          %s747 = sadd.s32 %s746, %s744
          %s748 = smul.addr %s747, 8
          %s749 = scalar_lea.vmem %s0, %s748
        $region88: #{tpu_custom_call.1} parent=83 // pred_fallthru
          _
        // Predicated region
        $region89: #{tpu_custom_call.1} parent=83 // pred_check
          %p750 = pneg %p107
        $region90: #{tpu_custom_call.1} parent=83 // pred_check_branch
          %752 = sbr.rel (%p750) target = $region92
        $region91: #{tpu_custom_call.1} parent=83 // pred_region
          %p753 = scmp.lt.s32.totalorder %s54, 1
          %s754 = scalar_select %p753, %s54, 1
          %s755 = smul.addr %s754, 8
          %s756 = scalar_lea.vmem %s1, %s755
        $region92: #{tpu_custom_call.1} parent=83 // pred_fallthru
          _
        // Predicated region
        $region93: #{tpu_custom_call.1} parent=83 // pred_check
          %p757 = pneg %p133
        $region94: #{tpu_custom_call.1} parent=83 // pred_check_branch
          %759 = sbr.rel (%p757) target = $region96
        $region95: #{tpu_custom_call.1} parent=83 // pred_region
          %s760 = sand.u32 %s123, 1
          %s761 = scalar_lea.sflag [#allocation3], %s760
          %s762 = sand.u32 %s123, 1
          %s763 = scalar_lea.vmem [#allocation2], %s762
          %s765 = ssub.s32 16, 16
          %766 = vsyncadd %s761, %s765
          %s767 = smul.addr %s54, 16
          %s768 = scalar_lea.hbm %s2, %s767
          %s770 = sshll.u32 %s763, 4
          %s771 = int_to_ptr.vmem [resolvable:$true] %s770
          %773 = dma.hbm_to_vmem [thread:$0]  %s768, 16, %s771, %s761
        $region96: #{tpu_custom_call.1} parent=83 // pred_fallthru
          _
        // Predicated region
        $region97: #{tpu_custom_call.1} parent=83 // pred_check
          %p774 = pneg %p159
        $region98: #{tpu_custom_call.1} parent=83 // pred_check_branch
          %776 = sbr.rel (%p774) target = $region100
        $region99: #{tpu_custom_call.1} parent=83 // pred_region
          %s777 = sand.u32 %s47, 1
          %s778 = scalar_lea.sflag [#allocation6], %s777
          %s779 = sand.u32 %s149, 1
          %s780 = scalar_lea.vmem [#allocation5], %s779
          %s782 = ssub.s32 16, 16
          %783 = vsyncadd %s778, %s782
          %s784 = smul.addr %s54, 16
          %s785 = scalar_lea.hbm %s3, %s784
          %s787 = sshll.u32 %s780, 4
          %s788 = int_to_ptr.vmem [resolvable:$true] %s787
          %790 = dma.hbm_to_vmem [thread:$0]  %s785, 16, %s788, %s778
        $region100: #{tpu_custom_call.1} parent=83 // pred_fallthru
          _
        // Predicated region
        $region101: #{tpu_custom_call.1} parent=83 // pred_check
          %p791 = pneg %p185
        $region102: #{tpu_custom_call.1} parent=83 // pred_check_branch
          %793 = sbr.rel (%p791) target = $region104
        $region103: #{tpu_custom_call.1} parent=83 // pred_region
          %s794 = sand.u32 %s47, 1
          %s795 = scalar_lea.sflag [#allocation6], %s794
          %s796 = sand.u32 %s175, 1
          %s797 = scalar_lea.vmem [#allocation7], %s796
          %s799 = ssub.s32 16, 16
          %800 = vsyncadd %s795, %s799
          %s801 = smul.addr %s54, 16
          %s802 = scalar_lea.hbm %s4, %s801
          %s804 = sshll.u32 %s797, 4
          %s805 = int_to_ptr.vmem [resolvable:$true] %s804
          %807 = dma.hbm_to_vmem [thread:$0]  %s802, 16, %s805, %s795
        $region104: #{tpu_custom_call.1} parent=83 // pred_fallthru
          _
        // Predicated region
        $region105: #{tpu_custom_call.1} parent=83 // pred_check
          %p808 = pneg %p211
        $region106: #{tpu_custom_call.1} parent=83 // pred_check_branch
          %810 = sbr.rel (%p808) target = $region108
        $region107: #{tpu_custom_call.1} parent=83 // pred_region
          %s811 = sand.u32 %s47, 1
          %s812 = scalar_lea.sflag [#allocation9], %s811
          %s813 = sand.u32 %s201, 1
          %s814 = scalar_lea.vmem [#allocation8], %s813
          %s816 = ssub.s32 16, 16
          %817 = vsyncadd %s812, %s816
          %s818 = smul.addr %s54, 16
          %s819 = scalar_lea.hbm %s5, %s818
          %s821 = sshll.u32 %s814, 4
          %s822 = int_to_ptr.vmem [resolvable:$true] %s821
          %824 = dma.hbm_to_vmem [thread:$0]  %s819, 16, %s822, %s812
        $region108: #{tpu_custom_call.1} parent=83 // pred_fallthru
          _
        // Predicated region
        $region109: #{tpu_custom_call.1} parent=83 // pred_check
          %p825 = pneg %p237
        $region110: #{tpu_custom_call.1} parent=83 // pred_check_branch
          %827 = sbr.rel (%p825) target = $region112
        $region111: #{tpu_custom_call.1} parent=83 // pred_region
          %s828 = sand.u32 %s47, 1
          %s829 = scalar_lea.sflag [#allocation9], %s828
          %s830 = sand.u32 %s227, 1
          %s831 = scalar_lea.vmem [#allocation10], %s830
          %s833 = ssub.s32 16, 16
          %834 = vsyncadd %s829, %s833
          %s835 = smul.addr %s54, 16
          %s836 = scalar_lea.hbm %s6, %s835
          %s838 = sshll.u32 %s831, 4
          %s839 = int_to_ptr.vmem [resolvable:$true] %s838
          %841 = dma.hbm_to_vmem [thread:$0]  %s836, 16, %s839, %s829
        $region112: #{tpu_custom_call.1} parent=83 // pred_fallthru
          _
        // Predicated region
        $region113: #{tpu_custom_call.1} parent=83 // pred_check
          %p842 = pneg %p263
        $region114: #{tpu_custom_call.1} parent=83 // pred_check_branch
          %844 = sbr.rel (%p842) target = $region116
        $region115: #{tpu_custom_call.1} parent=83 // pred_region
          %s845 = sand.u32 %s47, 1
          %s846 = scalar_lea.sflag [#allocation12], %s845
          %s847 = sand.u32 %s253, 1
          %s848 = scalar_lea.vmem [#allocation11], %s847
          %s850 = ssub.s32 16, 16
          %851 = vsyncadd %s846, %s850
          %s852 = smul.addr %s54, 16
          %s853 = scalar_lea.hbm %s7, %s852
          %s855 = sshll.u32 %s848, 4
          %s856 = int_to_ptr.vmem [resolvable:$true] %s855
          %858 = dma.hbm_to_vmem [thread:$0]  %s853, 16, %s856, %s846
        $region116: #{tpu_custom_call.1} parent=83 // pred_fallthru
          _
      $region84: #{tpu_custom_call.1} parent=5 // pred_fallthru
        _
      %p859 = scmp.le.s32.totalorder 1, %s47
      %p860 = scmp.lt.s32.totalorder %s47, 3
      %p861 = pnand %p859, %p860
      %p862 = pneg %p861
      // Predicated region
      $region117: #{tpu_custom_call.1} parent=5 // pred_check
        _
      $region118: #{tpu_custom_call.1} parent=5 // pred_check_branch
        %864 = sbr.rel (%p861) target = $region120
      $region119: #{tpu_custom_call.1} parent=5 // pred_region
        %s865 = ssub.s32 %s47, 1
        %s866 = sand.u32 %s126, 1
        %s867 = scalar_lea.sflag [#allocation3], %s866
        %s868 = sand.u32 %s126, 1
        %s869 = scalar_lea.vmem [#allocation2], %s868
        // Predicated region
        $region121: #{tpu_custom_call.1} parent=119 // pred_check
          %p870 = pneg %p139
        $region122: #{tpu_custom_call.1} parent=119 // pred_check_branch
          %872 = sbr.rel (%p870) target = $region124
        $region123: #{tpu_custom_call.1} parent=119 // pred_region
          %873 = dma.done %s867, 16
        $region124: #{tpu_custom_call.1} parent=119 // pred_fallthru
          _
        %s874 = sand.u32 %s52, 1
        %s875 = scalar_lea.sflag [#allocation6], %s874
        %s876 = sand.u32 %s152, 1
        %s877 = scalar_lea.vmem [#allocation5], %s876
        // Predicated region
        $region125: #{tpu_custom_call.1} parent=119 // pred_check
          %p878 = pneg %p165
        $region126: #{tpu_custom_call.1} parent=119 // pred_check_branch
          %880 = sbr.rel (%p878) target = $region128
        $region127: #{tpu_custom_call.1} parent=119 // pred_region
          %881 = dma.done %s875, 16
        $region128: #{tpu_custom_call.1} parent=119 // pred_fallthru
          _
        %s882 = sand.u32 %s52, 1
        %s883 = scalar_lea.sflag [#allocation6], %s882
        %s884 = sand.u32 %s178, 1
        %s885 = scalar_lea.vmem [#allocation7], %s884
        // Predicated region
        $region129: #{tpu_custom_call.1} parent=119 // pred_check
          %p886 = pneg %p191
        $region130: #{tpu_custom_call.1} parent=119 // pred_check_branch
          %888 = sbr.rel (%p886) target = $region132
        $region131: #{tpu_custom_call.1} parent=119 // pred_region
          %889 = dma.done %s883, 16
        $region132: #{tpu_custom_call.1} parent=119 // pred_fallthru
          _
        %s890 = sand.u32 %s52, 1
        %s891 = scalar_lea.sflag [#allocation9], %s890
        %s892 = sand.u32 %s204, 1
        %s893 = scalar_lea.vmem [#allocation8], %s892
        // Predicated region
        $region133: #{tpu_custom_call.1} parent=119 // pred_check
          %p894 = pneg %p217
        $region134: #{tpu_custom_call.1} parent=119 // pred_check_branch
          %896 = sbr.rel (%p894) target = $region136
        $region135: #{tpu_custom_call.1} parent=119 // pred_region
          %897 = dma.done %s891, 16
        $region136: #{tpu_custom_call.1} parent=119 // pred_fallthru
          _
        %s898 = sand.u32 %s52, 1
        %s899 = scalar_lea.sflag [#allocation9], %s898
        %s900 = sand.u32 %s230, 1
        %s901 = scalar_lea.vmem [#allocation10], %s900
        // Predicated region
        $region137: #{tpu_custom_call.1} parent=119 // pred_check
          %p902 = pneg %p243
        $region138: #{tpu_custom_call.1} parent=119 // pred_check_branch
          %904 = sbr.rel (%p902) target = $region140
        $region139: #{tpu_custom_call.1} parent=119 // pred_region
          %905 = dma.done %s899, 16
        $region140: #{tpu_custom_call.1} parent=119 // pred_fallthru
          _
        %s906 = sand.u32 %s52, 1
        %s907 = scalar_lea.sflag [#allocation12], %s906
        %s908 = sand.u32 %s256, 1
        %s909 = scalar_lea.vmem [#allocation11], %s908
        // Predicated region
        $region141: #{tpu_custom_call.1} parent=119 // pred_check
          %p910 = pneg %p269
        $region142: #{tpu_custom_call.1} parent=119 // pred_check_branch
          %912 = sbr.rel (%p910) target = $region144
        $region143: #{tpu_custom_call.1} parent=119 // pred_region
          %913 = dma.done %s907, 16
        $region144: #{tpu_custom_call.1} parent=119 // pred_fallthru
          _
        // Predicated region
        $region145: #{tpu_custom_call.1} parent=119 // pred_check
          %p914 = pneg %p311
        $region146: #{tpu_custom_call.1} parent=119 // pred_check_branch
          %916 = sbr.rel (%p914) target = $region148
        $region147: #{tpu_custom_call.1} parent=119 // pred_region
          %917 = dma.done [#allocation12], 16
        $region148: #{tpu_custom_call.1} parent=119 // pred_fallthru
          _
        // Predicated region
        $region149: #{tpu_custom_call.1} parent=119 // pred_check
          %p918 = pneg %p395
        $region150: #{tpu_custom_call.1} parent=119 // pred_check_branch
          %920 = sbr.rel (%p918) target = $region152
        $region151: #{tpu_custom_call.1} parent=119 // pred_region
          %921 = dma.done [#allocation15], 16
        $region152: #{tpu_custom_call.1} parent=119 // pred_fallthru
          _
        %p922 = scmp.lt.s32.totalorder %s56, 1
        %s923 = scalar_select %p922, %s56, 1
        %p924 = scmp.lt.s32.totalorder %s57, 0
        %s925 = scalar_select %p924, %s57, 0
        %s926 = sadd.s32 %s925, %s923
        %s927 = smul.addr %s926, 8
        %s928 = scalar_lea.vmem %s0, %s927
        %p929 = pneg %p87
        %p930 = pneg %p84
        %p931 = scmp.lt.s32.totalorder %s56, 1
        %s932 = scalar_select %p931, %s56, 1
        %s933 = smul.addr %s932, 8
        %s934 = scalar_lea.vmem %s1, %s933
        %p935 = pneg %p113
        %p936 = pneg %p110
        %s937 = sand.u32 %s126, 1
        %s938 = scalar_lea.sflag [#allocation3], %s937
        %s939 = sand.u32 %s126, 1
        %s940 = scalar_lea.vmem [#allocation2], %s939
        %p941 = pneg %p139
        %p942 = pneg %p136
        %s943 = sand.u32 %s52, 1
        %s944 = scalar_lea.sflag [#allocation6], %s943
        %s945 = sand.u32 %s152, 1
        %s946 = scalar_lea.vmem [#allocation5], %s945
        %p947 = pneg %p165
        %p948 = pneg %p162
        %s949 = sand.u32 %s52, 1
        %s950 = scalar_lea.sflag [#allocation6], %s949
        %s951 = sand.u32 %s178, 1
        %s952 = scalar_lea.vmem [#allocation7], %s951
        %p953 = pneg %p191
        %p954 = pneg %p188
        %s955 = sand.u32 %s52, 1
        %s956 = scalar_lea.sflag [#allocation9], %s955
        %s957 = sand.u32 %s204, 1
        %s958 = scalar_lea.vmem [#allocation8], %s957
        %p959 = pneg %p217
        %p960 = pneg %p214
        %s961 = sand.u32 %s52, 1
        %s962 = scalar_lea.sflag [#allocation9], %s961
        %s963 = sand.u32 %s230, 1
        %s964 = scalar_lea.vmem [#allocation10], %s963
        %p965 = pneg %p243
        %p966 = pneg %p240
        %s967 = sand.u32 %s52, 1
        %s968 = scalar_lea.sflag [#allocation12], %s967
        %s969 = sand.u32 %s256, 1
        %s970 = scalar_lea.vmem [#allocation11], %s969
        %p971 = pneg %p269
        %p972 = pneg %p266
        %p973 = pneg %p290
        %p974 = pneg %p287
        %p975 = pneg %p311
        %p976 = pneg %p308
        %p977 = pneg %p332
        %p978 = pneg %p329
        %p979 = pneg %p353
        %p980 = pneg %p350
        %p981 = pneg %p374
        %p982 = pneg %p371
        %p983 = pneg %p395
        %p984 = pneg %p392
        %p985 = pneg %p416
        %p986 = pneg %p413
        %p987 = pneg %p437
        %p988 = pneg %p434
        %p989 = pneg %p458
        %p990 = pneg %p455
        %p991 = pneg %p479
        %p992 = pneg %p476
        %p993 = pneg %p500
        %p994 = pneg %p497
        %p995 = pneg %p521
        %p996 = pneg %p518
        %p997 = pneg %p542
        %p998 = pneg %p539
        %p999 = pneg %p563
        %p1000 = pneg %p560
        %p1001 = pneg %p584
        %p1002 = pneg %p581
        %p1003 = pneg %p605
        %p1004 = pneg %p602
        %p1005 = pneg %p626
        %p1006 = pneg %p623
        %p1007 = pneg %p654
        %p1008 = pneg %p651
        %s1009 = sand.u32 %s641, 1
        %s1010 = scalar_lea.sflag [#allocation4], %s1009
        %s1011 = sand.u32 %s641, 1
        %s1012 = smul.addr %s1011, 8
        %s1013 = scalar_lea.vmem [#allocation16], %s1012
        %p1014 = scmp.lt.s32.totalorder %s56, 1
        %s1015 = scalar_select %p1014, %s56, 1
        %p1016 = scmp.lt.s32.totalorder %s57, 0
        %s1017 = scalar_select %p1016, %s57, 0
        %s1018 = sadd.s32 %s1017, %s1015
        %s1019 = smul.addr %s1018, 8
        %s1020 = scalar_lea.vmem %s0, %s1019
        %p1021 = scmp.lt.s32.totalorder %s56, 1
        %s1022 = scalar_select %p1021, %s56, 1
        %s1023 = smul.addr %s1022, 8
        %s1024 = scalar_lea.vmem %s1, %s1023
        %v1026 = vld [vmem:[%s1020] sm:$0xff]
        %v1027 = vld [vmem:[%s1024] sm:$0xff]
        %v1028 = vld [vmem:[%s869] sm:$0x1]
        %v1029 = vld [vmem:[%s877] sm:$0x1]
        %v1030 = vld [vmem:[%s885] sm:$0x1]
        %v1031 = vld [vmem:[%s893] sm:$0x1]
        %v1032 = vld [vmem:[%s901] sm:$0x1]
        %v1033 = vld [vmem:[%s909] sm:$0x1]
        %v1034 = vld [vmem:[%s8] sm:$0x1]
        %v1035 = vld [vmem:[#allocation13] sm:$0x1]
        %vm1036 = vcmask 261120
        %v1037 = vsel %vm1036, %v1026, 0.0
        %1038 = vadd.xlane.f32.xlu0 %v1037
        %v1039 = vpop.xlane.xlu0 %1038
        %v1040 = vrcp.pop 32.0
        %v1041 = vmul.f32 %v1039, %v1040
        %v1042 = vsub.f32 %v1026, %v1041
        %v1043 = vmul.f32 %v1042, %v1042
        %v1044 = vsel %vm1036, %v1043, 0.0
        %1045 = vadd.xlane.f32.xlu0 %v1044
        %v1046 = vpop.xlane.xlu0 %1045
        %v1047 = vmul.f32 %v1046, %v1040
        %v1048 = vadd.f32 %v1047, 1e-05
        %v1049 = vrsqrt.pop %v1048
        %v1050 = vmul.f32 %v1042, %v1049
        %v1052 = vlaneseq
        %v1053 = vshrl.u32 %v1052, 7
        %v1054 = vsub.s32 0, %v1053
        %v1055 = vrot.slane %v1034, %v1054
        %v1057 = vmul.f32 %v1050, %v1055
        %v1059 = vlaneseq
        %v1060 = vshrl.u32 %v1059, 7
        %v1061 = vsub.s32 0, %v1060
        %v1062 = vrot.slane %v1035, %v1061
        %v1064 = vadd.f32 %v1057, %v1062
        %v1065 = vadd.f32 %v1029, 1.0
        %v1067 = vlaneseq
        %v1068 = vshrl.u32 %v1067, 7
        %v1069 = vsub.s32 0, %v1068
        %v1070 = vrot.slane %v1065, %v1069
        %v1072 = vmul.f32 %v1064, %v1070
        %v1074 = vlaneseq
        %v1075 = vshrl.u32 %v1074, 7
        %v1076 = vsub.s32 0, %v1075
        %v1077 = vrot.slane %v1028, %v1076
        %v1079 = vadd.f32 %v1072, %v1077
        %v1080 = vsel %vm1036, %v1027, 0.0
        %1081 = vadd.xlane.f32.xlu0 %v1080
        %v1082 = vpop.xlane.xlu0 %1081
        %v1083 = vmul.f32 %v1082, %v1040
        %v1084 = vsub.f32 %v1027, %v1083
        %v1085 = vmul.f32 %v1084, %v1084
        %v1086 = vsel %vm1036, %v1085, 0.0
        %1087 = vadd.xlane.f32.xlu0 %v1086
        %v1088 = vpop.xlane.xlu0 %1087
        %v1089 = vmul.f32 %v1088, %v1040
        %v1090 = vadd.f32 %v1089, 1e-05
        %v1091 = vrsqrt.pop %v1090
        %v1092 = vmul.f32 %v1084, %v1091
        %v1093 = vmul.f32 %v1092, %v1055
        %v1094 = vadd.f32 %v1093, %v1062
        %v1095 = vmul.f32 %v1094, %v1070
        %v1096 = vadd.f32 %v1095, %v1077
        %v1097 = vpack.c.bf16 %v1079, %v1079
        %v1098 = vld [vmem:[%s10] sm:$0xf]
        %v1099 = vld [vmem:[%s10 + $0x4] sm:$0xf]
        %v1100 = vld [vmem:[%s10 + $0x8] sm:$0xf]
        %v1101 = vld [vmem:[%s10 + $0xc] sm:$0xf]
        %v1106 = vunpack.c.l.b16 %v1098
        %v1107 = vunpack.c.l.b16 %v1099
        %v1108 = vunpack.c.l.b16 %v1100
        %v1109 = vunpack.c.l.b16 %v1101
        %v1110 = vpack.c.b16 %v1107, %v1106
        %v1111 = vpack.c.b16 %v1109, %v1108
        %v1115 = vsel %vm1036, %v1097, 0
        %1117 = vmatprep.subr.bf16.mxu0 0
        %1118 = vmatpush1.bf16.msra.mxu0 %v1110
        %1119 = vmatprep.subr.bf16.mxu0 0
        %1120 = vmatpush1.bf16.msra.mxu0 %v1111
        %1121 = vmatprep.subr.bf16.mxu0 0
        %1122 = vmatpush1.bf16.msra.mxu0 0
        %1123 = vmatprep.subr.bf16.mxu0 0
        %1124 = vmatpush1.bf16.msra.mxu0 0
        %1125 = vmatprep.subr.bf16.mxu0 0
        %1126 = vmatpush1.bf16.msra.mxu0 0
        %1127 = vmatprep.subr.bf16.mxu0 0
        %1128 = vmatpush1.bf16.msra.mxu0 0
        %1129 = vmatprep.subr.bf16.mxu0 0
        %1130 = vmatpush1.bf16.msra.mxu0 0
        %1131 = vmatprep.subr.bf16.mxu0 0
        %1132 = vmatpush1.bf16.msra.mxu0 0
        %1133 = vmatprep.subr.bf16.mxu0 0
        %1134 = vmatpush1.bf16.msra.mxu0 0
        %1135 = vmatprep.subr.bf16.mxu0 0
        %1136 = vmatpush1.bf16.msra.mxu0 0
        %1137 = vmatprep.subr.bf16.mxu0 0
        %1138 = vmatpush1.bf16.msra.mxu0 0
        %1139 = vmatprep.subr.bf16.mxu0 0
        %1140 = vmatpush1.bf16.msra.mxu0 0
        %1141 = vmatprep.subr.bf16.mxu0 0
        %1142 = vmatpush1.bf16.msra.mxu0 0
        %1143 = vmatprep.subr.bf16.mxu0 0
        %1144 = vmatpush1.bf16.msra.mxu0 0
        %1145 = vmatprep.subr.bf16.mxu0 0
        %1146 = vmatpush1.bf16.msra.mxu0 0
        %1147 = vmatprep.subr.bf16.mxu0 0
        %1148 = vmatpush1.bf16.msra.mxu0 0
        %1149 = vmatprep.mubr.bf16.mxu0 0
        %1150 = vmatmul.mubr.bf16.gmra.mrb[0].mxu0 %v1115
        %v1151 = vpop.f32.mrb[0].mxu0
        %v1152 = vadd.f32 0.0, %v1151
        %v1153 = vpop.f32.mrb[0].mxu0
        %v1154 = vpop.f32.mrb[0].mxu0
        %v1155 = vpop.f32.mrb[0].mxu0
        %1156 = vdwg.mxu0
        %v1157 = vpack.c.bf16 %v1096, %v1096
        %v1158 = vld [vmem:[%s11] sm:$0xf]
        %v1159 = vld [vmem:[%s11 + $0x4] sm:$0xf]
        %v1160 = vld [vmem:[%s11 + $0x8] sm:$0xf]
        %v1161 = vld [vmem:[%s11 + $0xc] sm:$0xf]
        %v1166 = vunpack.c.l.b16 %v1158
        %v1167 = vunpack.c.l.b16 %v1159
        %v1168 = vunpack.c.l.b16 %v1160
        %v1169 = vunpack.c.l.b16 %v1161
        %v1170 = vpack.c.b16 %v1167, %v1166
        %v1171 = vpack.c.b16 %v1169, %v1168
        %v1175 = vsel %vm1036, %v1157, 0
        %1177 = vmatprep.subr.bf16.mxu0 0
        %1178 = vmatpush1.bf16.msra.mxu0 %v1170
        %1179 = vmatprep.subr.bf16.mxu0 0
        %1180 = vmatpush1.bf16.msra.mxu0 %v1171
        %1181 = vmatprep.subr.bf16.mxu0 0
        %1182 = vmatpush1.bf16.msra.mxu0 0
        %1183 = vmatprep.subr.bf16.mxu0 0
        %1184 = vmatpush1.bf16.msra.mxu0 0
        %1185 = vmatprep.subr.bf16.mxu0 0
        %1186 = vmatpush1.bf16.msra.mxu0 0
        %1187 = vmatprep.subr.bf16.mxu0 0
        %1188 = vmatpush1.bf16.msra.mxu0 0
        %1189 = vmatprep.subr.bf16.mxu0 0
        %1190 = vmatpush1.bf16.msra.mxu0 0
        %1191 = vmatprep.subr.bf16.mxu0 0
        %1192 = vmatpush1.bf16.msra.mxu0 0
        %1193 = vmatprep.subr.bf16.mxu0 0
        %1194 = vmatpush1.bf16.msra.mxu0 0
        %1195 = vmatprep.subr.bf16.mxu0 0
        %1196 = vmatpush1.bf16.msra.mxu0 0
        %1197 = vmatprep.subr.bf16.mxu0 0
        %1198 = vmatpush1.bf16.msra.mxu0 0
        %1199 = vmatprep.subr.bf16.mxu0 0
        %1200 = vmatpush1.bf16.msra.mxu0 0
        %1201 = vmatprep.subr.bf16.mxu0 0
        %1202 = vmatpush1.bf16.msra.mxu0 0
        %1203 = vmatprep.subr.bf16.mxu0 0
        %1204 = vmatpush1.bf16.msra.mxu0 0
        %1205 = vmatprep.subr.bf16.mxu0 0
        %1206 = vmatpush1.bf16.msra.mxu0 0
        %1207 = vmatprep.subr.bf16.mxu0 0
        %1208 = vmatpush1.bf16.msra.mxu0 0
        %1209 = vmatprep.mubr.bf16.mxu0 0
        %1210 = vmatmul.mubr.bf16.gmra.mrb[0].mxu0 %v1175
        %v1211 = vpop.f32.mrb[0].mxu0
        %v1212 = vadd.f32 0.0, %v1211
        %v1213 = vpop.f32.mrb[0].mxu0
        %v1214 = vpop.f32.mrb[0].mxu0
        %v1215 = vpop.f32.mrb[0].mxu0
        %1216 = vdwg.mxu0
        %v1217 = vld [vmem:[%s12] sm:$0xf]
        %v1218 = vld [vmem:[%s12 + $0x4] sm:$0xf]
        %v1219 = vld [vmem:[%s12 + $0x8] sm:$0xf]
        %v1220 = vld [vmem:[%s12 + $0xc] sm:$0xf]
        %v1225 = vunpack.c.l.b16 %v1217
        %v1226 = vunpack.c.l.b16 %v1218
        %v1227 = vunpack.c.l.b16 %v1219
        %v1228 = vunpack.c.l.b16 %v1220
        %v1229 = vpack.c.b16 %v1226, %v1225
        %v1230 = vpack.c.b16 %v1228, %v1227
        %1233 = vmatprep.subr.bf16.mxu0 0
        %1234 = vmatpush1.bf16.msra.mxu0 %v1229
        %1235 = vmatprep.subr.bf16.mxu0 0
        %1236 = vmatpush1.bf16.msra.mxu0 %v1230
        %1237 = vmatprep.subr.bf16.mxu0 0
        %1238 = vmatpush1.bf16.msra.mxu0 0
        %1239 = vmatprep.subr.bf16.mxu0 0
        %1240 = vmatpush1.bf16.msra.mxu0 0
        %1241 = vmatprep.subr.bf16.mxu0 0
        %1242 = vmatpush1.bf16.msra.mxu0 0
        %1243 = vmatprep.subr.bf16.mxu0 0
        %1244 = vmatpush1.bf16.msra.mxu0 0
        %1245 = vmatprep.subr.bf16.mxu0 0
        %1246 = vmatpush1.bf16.msra.mxu0 0
        %1247 = vmatprep.subr.bf16.mxu0 0
        %1248 = vmatpush1.bf16.msra.mxu0 0
        %1249 = vmatprep.subr.bf16.mxu0 0
        %1250 = vmatpush1.bf16.msra.mxu0 0
        %1251 = vmatprep.subr.bf16.mxu0 0
        %1252 = vmatpush1.bf16.msra.mxu0 0
        %1253 = vmatprep.subr.bf16.mxu0 0
        %1254 = vmatpush1.bf16.msra.mxu0 0
        %1255 = vmatprep.subr.bf16.mxu0 0
        %1256 = vmatpush1.bf16.msra.mxu0 0
        %1257 = vmatprep.subr.bf16.mxu0 0
        %1258 = vmatpush1.bf16.msra.mxu0 0
        %1259 = vmatprep.subr.bf16.mxu0 0
        %1260 = vmatpush1.bf16.msra.mxu0 0
        %1261 = vmatprep.subr.bf16.mxu0 0
        %1262 = vmatpush1.bf16.msra.mxu0 0
        %1263 = vmatprep.subr.bf16.mxu0 0
        %1264 = vmatpush1.bf16.msra.mxu0 0
        %1265 = vmatprep.mubr.bf16.mxu0 0
        %1266 = vmatmul.mubr.bf16.gmra.mrb[0].mxu0 %v1175
        %v1267 = vpop.f32.mrb[0].mxu0
        %v1268 = vadd.f32 0.0, %v1267
        %v1269 = vpop.f32.mrb[0].mxu0
        %v1270 = vpop.f32.mrb[0].mxu0
        %v1271 = vpop.f32.mrb[0].mxu0
        %1272 = vdwg.mxu0
        %1274 = vrot.lane.b32.xlu0 %v1152, 112
        %v1275 = vpop.permute.xlu0 %1274
        %v1277 = vld [vmem:[#allocation14] sm:$0x1]
        %v1278 = vld [vmem:[%s14] sm:$0x1]
        %vm1279 = vcmask 130048
        %v1280 = vsel %vm1279, %v1152, 0.0
        %1281 = vadd.xlane.f32.xlu0 %v1280
        %v1282 = vpop.xlane.xlu0 %1281
        %v1283 = vsel %vm1279, %v1275, 0.0
        %1284 = vadd.xlane.f32.xlu0 %v1283
        %v1285 = vpop.xlane.xlu0 %1284
        %v1286 = vrcp.pop 16.0
        %v1287 = vmul.f32 %v1282, %v1286
        %v1288 = vmul.f32 %v1285, %v1286
        %v1289 = vsub.f32 %v1152, %v1287
        %v1290 = vsub.f32 %v1275, %v1288
        %v1291 = vmul.f32 %v1289, %v1289
        %v1292 = vmul.f32 %v1290, %v1290
        %v1293 = vsel %vm1279, %v1291, 0.0
        %1294 = vadd.xlane.f32.xlu0 %v1293
        %v1295 = vpop.xlane.xlu0 %1294
        %v1296 = vsel %vm1279, %v1292, 0.0
        %1297 = vadd.xlane.f32.xlu0 %v1296
        %v1298 = vpop.xlane.xlu0 %1297
        %v1299 = vmul.f32 %v1295, %v1286
        %v1300 = vmul.f32 %v1298, %v1286
        %v1301 = vadd.f32 %v1299, 1e-06
        %v1302 = vadd.f32 %v1300, 1e-06
        %v1303 = vrsqrt.pop %v1301
        %v1304 = vrsqrt.pop %v1302
        %v1305 = vmul.f32 %v1289, %v1303
        %v1306 = vmul.f32 %v1290, %v1304
        %v1308 = vlaneseq
        %v1309 = vshrl.u32 %v1308, 7
        %v1310 = vsub.s32 0, %v1309
        %v1311 = vrot.slane %v1277, %v1310
        %v1313 = vmul.f32 %v1305, %v1311
        %v1314 = vmul.f32 %v1306, %v1311
        %v1316 = vlaneseq
        %v1317 = vshrl.u32 %v1316, 7
        %v1318 = vsub.s32 0, %v1317
        %v1319 = vrot.slane %v1278, %v1318
        %v1321 = vadd.f32 %v1313, %v1319
        %v1322 = vadd.f32 %v1314, %v1319
        %1324 = vrot.lane.b32.xlu0 %v1212, 112
        %v1325 = vpop.permute.xlu0 %1324
        %v1327 = vld [vmem:[%s15] sm:$0x1]
        %v1328 = vld [vmem:[%s16] sm:$0x1]
        %v1329 = vsel %vm1279, %v1212, 0.0
        %1330 = vadd.xlane.f32.xlu0 %v1329
        %v1331 = vpop.xlane.xlu0 %1330
        %v1332 = vsel %vm1279, %v1325, 0.0
        %1333 = vadd.xlane.f32.xlu0 %v1332
        %v1334 = vpop.xlane.xlu0 %1333
        %v1335 = vmul.f32 %v1331, %v1286
        %v1336 = vmul.f32 %v1334, %v1286
        %v1337 = vsub.f32 %v1212, %v1335
        %v1338 = vsub.f32 %v1325, %v1336
        %v1339 = vmul.f32 %v1337, %v1337
        %v1340 = vmul.f32 %v1338, %v1338
        %v1341 = vsel %vm1279, %v1339, 0.0
        %1342 = vadd.xlane.f32.xlu0 %v1341
        %v1343 = vpop.xlane.xlu0 %1342
        %v1344 = vsel %vm1279, %v1340, 0.0
        %1345 = vadd.xlane.f32.xlu0 %v1344
        %v1346 = vpop.xlane.xlu0 %1345
        %v1347 = vmul.f32 %v1343, %v1286
        %v1348 = vmul.f32 %v1346, %v1286
        %v1349 = vadd.f32 %v1347, 1e-06
        %v1350 = vadd.f32 %v1348, 1e-06
        %v1351 = vrsqrt.pop %v1349
        %v1352 = vrsqrt.pop %v1350
        %v1353 = vmul.f32 %v1337, %v1351
        %v1354 = vmul.f32 %v1338, %v1352
        %v1356 = vlaneseq
        %v1357 = vshrl.u32 %v1356, 7
        %v1358 = vsub.s32 0, %v1357
        %v1359 = vrot.slane %v1327, %v1358
        %v1361 = vmul.f32 %v1353, %v1359
        %v1362 = vmul.f32 %v1354, %v1359
        %v1364 = vlaneseq
        %v1365 = vshrl.u32 %v1364, 7
        %v1366 = vsub.s32 0, %v1365
        %v1367 = vrot.slane %v1328, %v1366
        %v1369 = vadd.f32 %v1361, %v1367
        %v1370 = vadd.f32 %v1362, %v1367
        %1372 = vrot.lane.b32.xlu0 %v1268, 112
        %v1373 = vpop.permute.xlu0 %1372
        %v1375 = vpack.c.bf16 %v1321, %v1321
        %v1376 = vpack.c.bf16 %v1322, %v1322
        %v1377 = vpack.c.bf16 %v1369, %v1369
        %v1378 = vpack.c.bf16 %v1370, %v1370
        %v1380 = vsel %vm1279, %v1375, 0
        %v1383 = vsel %vm1279, %v1377, 0
        %1385 = vmatprep.subr.bf16.mxu0 0
        %1386 = vmatpush1.bf16.xpose.msra.mxu0 %v1383
        %1387 = vmatprep.subr.bf16.mxu0 0
        %1388 = vmatpush1.bf16.xpose.msra.mxu0 0
        %1389 = vmatprep.subr.bf16.mxu0 0
        %1390 = vmatpush1.bf16.xpose.msra.mxu0 0
        %1391 = vmatprep.subr.bf16.mxu0 0
        %1392 = vmatpush1.bf16.xpose.msra.mxu0 0
        %1393 = vmatprep.subr.bf16.mxu0 0
        %1394 = vmatpush1.bf16.xpose.msra.mxu0 0
        %1395 = vmatprep.subr.bf16.mxu0 0
        %1396 = vmatpush1.bf16.xpose.msra.mxu0 0
        %1397 = vmatprep.subr.bf16.mxu0 0
        %1398 = vmatpush1.bf16.xpose.msra.mxu0 0
        %1399 = vmatprep.subr.bf16.mxu0 0
        %1400 = vmatpush1.bf16.xpose.msra.mxu0 0
        %1401 = vmatprep.subr.bf16.mxu0 0
        %1402 = vmatpush1.bf16.xpose.msra.mxu0 0
        %1403 = vmatprep.subr.bf16.mxu0 0
        %1404 = vmatpush1.bf16.xpose.msra.mxu0 0
        %1405 = vmatprep.subr.bf16.mxu0 0
        %1406 = vmatpush1.bf16.xpose.msra.mxu0 0
        %1407 = vmatprep.subr.bf16.mxu0 0
        %1408 = vmatpush1.bf16.xpose.msra.mxu0 0
        %1409 = vmatprep.subr.bf16.mxu0 0
        %1410 = vmatpush1.bf16.xpose.msra.mxu0 0
        %1411 = vmatprep.subr.bf16.mxu0 0
        %1412 = vmatpush1.bf16.xpose.msra.mxu0 0
        %1413 = vmatprep.subr.bf16.mxu0 0
        %1414 = vmatpush1.bf16.xpose.msra.mxu0 0
        %1415 = vmatprep.subr.bf16.mxu0 0
        %1416 = vmatpush1.bf16.xpose.msra.mxu0 0
        %1417 = vmatprep.mubr.bf16.mxu0 0
        %1418 = vmatmul.mubr.bf16.gmra.mrb[0].mxu0 %v1380
        %v1419 = vpop.f32.mrb[0].mxu0
        %v1420 = vadd.f32 0.0, %v1419
        %v1421 = vpop.f32.mrb[0].mxu0
        %v1422 = vpop.f32.mrb[0].mxu0
        %v1423 = vpop.f32.mrb[0].mxu0
        %1424 = vdwg.mxu0
        %v1426 = vsel %vm1279, %v1376, 0
        %v1429 = vsel %vm1279, %v1378, 0
        %1431 = vmatprep.subr.bf16.mxu0 0
        %1432 = vmatpush1.bf16.xpose.msra.mxu0 %v1429
        %1433 = vmatprep.subr.bf16.mxu0 0
        %1434 = vmatpush1.bf16.xpose.msra.mxu0 0
        %1435 = vmatprep.subr.bf16.mxu0 0
        %1436 = vmatpush1.bf16.xpose.msra.mxu0 0
        %1437 = vmatprep.subr.bf16.mxu0 0
        %1438 = vmatpush1.bf16.xpose.msra.mxu0 0
        %1439 = vmatprep.subr.bf16.mxu0 0
        %1440 = vmatpush1.bf16.xpose.msra.mxu0 0
        %1441 = vmatprep.subr.bf16.mxu0 0
        %1442 = vmatpush1.bf16.xpose.msra.mxu0 0
        %1443 = vmatprep.subr.bf16.mxu0 0
        %1444 = vmatpush1.bf16.xpose.msra.mxu0 0
        %1445 = vmatprep.subr.bf16.mxu0 0
        %1446 = vmatpush1.bf16.xpose.msra.mxu0 0
        %1447 = vmatprep.subr.bf16.mxu0 0
        %1448 = vmatpush1.bf16.xpose.msra.mxu0 0
        %1449 = vmatprep.subr.bf16.mxu0 0
        %1450 = vmatpush1.bf16.xpose.msra.mxu0 0
        %1451 = vmatprep.subr.bf16.mxu0 0
        %1452 = vmatpush1.bf16.xpose.msra.mxu0 0
        %1453 = vmatprep.subr.bf16.mxu0 0
        %1454 = vmatpush1.bf16.xpose.msra.mxu0 0
        %1455 = vmatprep.subr.bf16.mxu0 0
        %1456 = vmatpush1.bf16.xpose.msra.mxu0 0
        %1457 = vmatprep.subr.bf16.mxu0 0
        %1458 = vmatpush1.bf16.xpose.msra.mxu0 0
        %1459 = vmatprep.subr.bf16.mxu0 0
        %1460 = vmatpush1.bf16.xpose.msra.mxu0 0
        %1461 = vmatprep.subr.bf16.mxu0 0
        %1462 = vmatpush1.bf16.xpose.msra.mxu0 0
        %1463 = vmatprep.mubr.bf16.mxu0 0
        %1464 = vmatmul.mubr.bf16.gmra.mrb[0].mxu0 %v1426
        %v1465 = vpop.f32.mrb[0].mxu0
        %v1466 = vadd.f32 0.0, %v1465
        %v1467 = vpop.f32.mrb[0].mxu0
        %v1468 = vpop.f32.mrb[0].mxu0
        %v1469 = vpop.f32.mrb[0].mxu0
        %1470 = vdwg.mxu0
        %v1471 = vmul.f32 %v1420, 0.25
        %v1472 = vmul.f32 %v1466, 0.25
        %vm1473 = vcmask 64512
        %v1474 = vsel %vm1473, %v1471, -inf
        %1475 = vmax.xlane.f32.xlu0 %v1474
        %v1476 = vpop.xlane.xlu0 %1475
        %v1477 = vsel %vm1473, %v1472, -inf
        %1478 = vmax.xlane.f32.xlu0 %v1477
        %v1479 = vpop.xlane.xlu0 %1478
        %v1480 = vsub.f32 %v1471, %v1476
        %v1481 = vsub.f32 %v1472, %v1479
        %v1482 = vmul.f32 %v1480, 1.442695
        %v1483 = vpow.pop %v1482
        %v1484 = vmul.f32 %v1481, 1.442695
        %v1485 = vpow.pop %v1484
        %v1486 = vsel %vm1473, %v1483, 0.0
        %1487 = vadd.xlane.f32.xlu0 %v1486
        %v1488 = vpop.xlane.xlu0 %1487
        %v1489 = vsel %vm1473, %v1485, 0.0
        %1490 = vadd.xlane.f32.xlu0 %v1489
        %v1491 = vpop.xlane.xlu0 %1490
        %v1492 = vrcp.pop %v1488
        %v1493 = vrcp.pop %v1491
        %v1494 = vmul.f32 %v1483, %v1492
        %v1495 = vmul.f32 %v1485, %v1493
        %v1496 = vpack.c.bf16 %v1494, %v1494
        %v1497 = vpack.c.bf16 %v1495, %v1495
        %v1498 = vpack.c.bf16 %v1268, %v1268
        %v1499 = vpack.c.bf16 %v1373, %v1373
        %v1501 = vsel %vm1473, %v1496, 0
        %vm1503 = vcmask 1043456
        %v1505 = vsel %vm1503, %v1498, 0
        %1507 = vmatprep.subr.bf16.mxu0 0
        %1508 = vmatpush1.bf16.msra.mxu0 %v1505
        %1509 = vmatprep.subr.bf16.mxu0 0
        %1510 = vmatpush1.bf16.msra.mxu0 0
        %1511 = vmatprep.subr.bf16.mxu0 0
        %1512 = vmatpush1.bf16.msra.mxu0 0
        %1513 = vmatprep.subr.bf16.mxu0 0
        %1514 = vmatpush1.bf16.msra.mxu0 0
        %1515 = vmatprep.subr.bf16.mxu0 0
        %1516 = vmatpush1.bf16.msra.mxu0 0
        %1517 = vmatprep.subr.bf16.mxu0 0
        %1518 = vmatpush1.bf16.msra.mxu0 0
        %1519 = vmatprep.subr.bf16.mxu0 0
        %1520 = vmatpush1.bf16.msra.mxu0 0
        %1521 = vmatprep.subr.bf16.mxu0 0
        %1522 = vmatpush1.bf16.msra.mxu0 0
        %1523 = vmatprep.subr.bf16.mxu0 0
        %1524 = vmatpush1.bf16.msra.mxu0 0
        %1525 = vmatprep.subr.bf16.mxu0 0
        %1526 = vmatpush1.bf16.msra.mxu0 0
        %1527 = vmatprep.subr.bf16.mxu0 0
        %1528 = vmatpush1.bf16.msra.mxu0 0
        %1529 = vmatprep.subr.bf16.mxu0 0
        %1530 = vmatpush1.bf16.msra.mxu0 0
        %1531 = vmatprep.subr.bf16.mxu0 0
        %1532 = vmatpush1.bf16.msra.mxu0 0
        %1533 = vmatprep.subr.bf16.mxu0 0
        %1534 = vmatpush1.bf16.msra.mxu0 0
        %1535 = vmatprep.subr.bf16.mxu0 0
        %1536 = vmatpush1.bf16.msra.mxu0 0
        %1537 = vmatprep.subr.bf16.mxu0 0
        %1538 = vmatpush1.bf16.msra.mxu0 0
        %1539 = vmatprep.mubr.bf16.mxu0 0
        %1540 = vmatmul.mubr.bf16.gmra.mrb[0].mxu0 %v1501
        %v1541 = vpop.f32.mrb[0].mxu0
        %v1542 = vadd.f32 0.0, %v1541
        %v1543 = vpop.f32.mrb[0].mxu0
        %v1544 = vpop.f32.mrb[0].mxu0
        %v1545 = vpop.f32.mrb[0].mxu0
        %1546 = vdwg.mxu0
        %v1548 = vsel %vm1473, %v1497, 0
        %v1551 = vsel %vm1503, %v1499, 0
        %1553 = vmatprep.subr.bf16.mxu0 0
        %1554 = vmatpush1.bf16.msra.mxu0 %v1551
        %1555 = vmatprep.subr.bf16.mxu0 0
        %1556 = vmatpush1.bf16.msra.mxu0 0
        %1557 = vmatprep.subr.bf16.mxu0 0
        %1558 = vmatpush1.bf16.msra.mxu0 0
        %1559 = vmatprep.subr.bf16.mxu0 0
        %1560 = vmatpush1.bf16.msra.mxu0 0
        %1561 = vmatprep.subr.bf16.mxu0 0
        %1562 = vmatpush1.bf16.msra.mxu0 0
        %1563 = vmatprep.subr.bf16.mxu0 0
        %1564 = vmatpush1.bf16.msra.mxu0 0
        %1565 = vmatprep.subr.bf16.mxu0 0
        %1566 = vmatpush1.bf16.msra.mxu0 0
        %1567 = vmatprep.subr.bf16.mxu0 0
        %1568 = vmatpush1.bf16.msra.mxu0 0
        %1569 = vmatprep.subr.bf16.mxu0 0
        %1570 = vmatpush1.bf16.msra.mxu0 0
        %1571 = vmatprep.subr.bf16.mxu0 0
        %1572 = vmatpush1.bf16.msra.mxu0 0
        %1573 = vmatprep.subr.bf16.mxu0 0
        %1574 = vmatpush1.bf16.msra.mxu0 0
        %1575 = vmatprep.subr.bf16.mxu0 0
        %1576 = vmatpush1.bf16.msra.mxu0 0
        %1577 = vmatprep.subr.bf16.mxu0 0
        %1578 = vmatpush1.bf16.msra.mxu0 0
        %1579 = vmatprep.subr.bf16.mxu0 0
        %1580 = vmatpush1.bf16.msra.mxu0 0
        %1581 = vmatprep.subr.bf16.mxu0 0
        %1582 = vmatpush1.bf16.msra.mxu0 0
        %1583 = vmatprep.subr.bf16.mxu0 0
        %1584 = vmatpush1.bf16.msra.mxu0 0
        %1585 = vmatprep.mubr.bf16.mxu0 0
        %1586 = vmatmul.mubr.bf16.gmra.mrb[0].mxu0 %v1548
        %v1587 = vpop.f32.mrb[0].mxu0
        %v1588 = vadd.f32 0.0, %v1587
        %v1589 = vpop.f32.mrb[0].mxu0
        %v1590 = vpop.f32.mrb[0].mxu0
        %v1591 = vpop.f32.mrb[0].mxu0
        %1592 = vdwg.mxu0
        %1594 = vrot.lane.b32.xlu0 %v1588, 16
        %v1595 = vpop.permute.xlu0 %1594
        %v1597 = vsel %vm1279, %v1542, %v1595
        %v1598 = vpack.c.bf16 %v1597, %v1597
        %v1599 = vld [vmem:[%s17] sm:$0xf]
        %v1600 = vld [vmem:[%s17 + $0x4] sm:$0xf]
        %v1601 = vld [vmem:[%s17 + $0x8] sm:$0xf]
        %v1602 = vld [vmem:[%s17 + $0xc] sm:$0xf]
        %v1603 = vld [vmem:[%s18] sm:$0x1]
        %v1605 = vlaneseq
        %v1606 = vshrl.u32 %v1605, 7
        %v1607 = vsub.s32 0, %v1606
        %v1608 = vrot.slane %v1603, %v1607
        %v1614 = vunpack.c.l.b16 %v1599
        %v1615 = vunpack.c.l.b16 %v1600
        %v1616 = vunpack.c.l.b16 %v1601
        %v1617 = vunpack.c.l.b16 %v1602
        %v1618 = vpack.c.b16 %v1615, %v1614
        %v1619 = vpack.c.b16 %v1617, %v1616
        %v1623 = vsel %vm1036, %v1598, 0
        %1625 = vmatprep.subr.bf16.mxu0 0
        %1626 = vmatpush1.bf16.msra.mxu0 %v1618
        %1627 = vmatprep.subr.bf16.mxu0 0
        %1628 = vmatpush1.bf16.msra.mxu0 %v1619
        %1629 = vmatprep.subr.bf16.mxu0 0
        %1630 = vmatpush1.bf16.msra.mxu0 0
        %1631 = vmatprep.subr.bf16.mxu0 0
        %1632 = vmatpush1.bf16.msra.mxu0 0
        %1633 = vmatprep.subr.bf16.mxu0 0
        %1634 = vmatpush1.bf16.msra.mxu0 0
        %1635 = vmatprep.subr.bf16.mxu0 0
        %1636 = vmatpush1.bf16.msra.mxu0 0
        %1637 = vmatprep.subr.bf16.mxu0 0
        %1638 = vmatpush1.bf16.msra.mxu0 0
        %1639 = vmatprep.subr.bf16.mxu0 0
        %1640 = vmatpush1.bf16.msra.mxu0 0
        %1641 = vmatprep.subr.bf16.mxu0 0
        %1642 = vmatpush1.bf16.msra.mxu0 0
        %1643 = vmatprep.subr.bf16.mxu0 0
        %1644 = vmatpush1.bf16.msra.mxu0 0
        %1645 = vmatprep.subr.bf16.mxu0 0
        %1646 = vmatpush1.bf16.msra.mxu0 0
        %1647 = vmatprep.subr.bf16.mxu0 0
        %1648 = vmatpush1.bf16.msra.mxu0 0
        %1649 = vmatprep.subr.bf16.mxu0 0
        %1650 = vmatpush1.bf16.msra.mxu0 0
        %1651 = vmatprep.subr.bf16.mxu0 0
        %1652 = vmatpush1.bf16.msra.mxu0 0
        %1653 = vmatprep.subr.bf16.mxu0 0
        %1654 = vmatpush1.bf16.msra.mxu0 0
        %1655 = vmatprep.subr.bf16.mxu0 0
        %1656 = vmatpush1.bf16.msra.mxu0 0
        %1657 = vmatprep.mubr.bf16.mxu0 0
        %1658 = vmatmul.mubr.bf16.gmra.mrb[0].mxu0 %v1623
        %v1659 = vpop.f32.mrb[0].mxu0
        %v1660 = vadd.f32 %v1608, %v1659
        %v1661 = vpop.f32.mrb[0].mxu0
        %v1662 = vpop.f32.mrb[0].mxu0
        %v1663 = vpop.f32.mrb[0].mxu0
        %1664 = vdwg.mxu0
        %v1666 = vlaneseq
        %v1667 = vshrl.u32 %v1666, 7
        %v1668 = vsub.s32 0, %v1667
        %v1669 = vrot.slane %v1030, %v1668
        %v1671 = vmul.f32 %v1669, %v1660
        %v1672 = vadd.f32 %v1026, %v1671
        %v1673 = vld [vmem:[%s19] sm:$0x1]
        %v1674 = vld [vmem:[%s20] sm:$0x1]
        %v1675 = vsel %vm1036, %v1672, 0.0
        %1676 = vadd.xlane.f32.xlu0 %v1675
        %v1677 = vpop.xlane.xlu0 %1676
        %v1678 = vmul.f32 %v1677, %v1040
        %v1679 = vsub.f32 %v1672, %v1678
        %v1680 = vmul.f32 %v1679, %v1679
        %v1681 = vsel %vm1036, %v1680, 0.0
        %1682 = vadd.xlane.f32.xlu0 %v1681
        %v1683 = vpop.xlane.xlu0 %1682
        %v1684 = vmul.f32 %v1683, %v1040
        %v1685 = vadd.f32 %v1684, 1e-05
        %v1686 = vrsqrt.pop %v1685
        %v1687 = vmul.f32 %v1679, %v1686
        %v1689 = vlaneseq
        %v1690 = vshrl.u32 %v1689, 7
        %v1691 = vsub.s32 0, %v1690
        %v1692 = vrot.slane %v1673, %v1691
        %v1694 = vmul.f32 %v1687, %v1692
        %v1696 = vlaneseq
        %v1697 = vshrl.u32 %v1696, 7
        %v1698 = vsub.s32 0, %v1697
        %v1699 = vrot.slane %v1674, %v1698
        %v1701 = vadd.f32 %v1694, %v1699
        %v1702 = vadd.f32 %v1032, 1.0
        %v1704 = vlaneseq
        %v1705 = vshrl.u32 %v1704, 7
        %v1706 = vsub.s32 0, %v1705
        %v1707 = vrot.slane %v1702, %v1706
        %v1709 = vmul.f32 %v1701, %v1707
        %v1711 = vlaneseq
        %v1712 = vshrl.u32 %v1711, 7
        %v1713 = vsub.s32 0, %v1712
        %v1714 = vrot.slane %v1031, %v1713
        %v1716 = vadd.f32 %v1709, %v1714
        %v1717 = vpack.c.bf16 %v1716, %v1716
        %v1718 = vld [vmem:[%s21] sm:$0xf]
        %v1719 = vld [vmem:[%s21 + $0x4] sm:$0xf]
        %v1720 = vld [vmem:[%s21 + $0x8] sm:$0xf]
        %v1721 = vld [vmem:[%s21 + $0xc] sm:$0xf]
        %v1722 = vld [vmem:[%s22] sm:$0x1]
        %v1724 = vlaneseq
        %v1725 = vshrl.u32 %v1724, 7
        %v1726 = vsub.s32 0, %v1725
        %v1727 = vrot.slane %v1722, %v1726
        %v1733 = vunpack.c.l.b16 %v1718
        %v1734 = vunpack.c.l.b16 %v1719
        %v1735 = vunpack.c.l.b16 %v1720
        %v1736 = vunpack.c.l.b16 %v1721
        %v1737 = vpack.c.b16 %v1734, %v1733
        %v1738 = vpack.c.b16 %v1736, %v1735
        %v1742 = vsel %vm1036, %v1717, 0
        %1744 = vmatprep.subr.bf16.mxu0 0
        %1745 = vmatpush1.bf16.msra.mxu0 %v1737
        %1746 = vmatprep.subr.bf16.mxu0 0
        %1747 = vmatpush1.bf16.msra.mxu0 %v1738
        %1748 = vmatprep.subr.bf16.mxu0 0
        %1749 = vmatpush1.bf16.msra.mxu0 0
        %1750 = vmatprep.subr.bf16.mxu0 0
        %1751 = vmatpush1.bf16.msra.mxu0 0
        %1752 = vmatprep.subr.bf16.mxu0 0
        %1753 = vmatpush1.bf16.msra.mxu0 0
        %1754 = vmatprep.subr.bf16.mxu0 0
        %1755 = vmatpush1.bf16.msra.mxu0 0
        %1756 = vmatprep.subr.bf16.mxu0 0
        %1757 = vmatpush1.bf16.msra.mxu0 0
        %1758 = vmatprep.subr.bf16.mxu0 0
        %1759 = vmatpush1.bf16.msra.mxu0 0
        %1760 = vmatprep.subr.bf16.mxu0 0
        %1761 = vmatpush1.bf16.msra.mxu0 0
        %1762 = vmatprep.subr.bf16.mxu0 0
        %1763 = vmatpush1.bf16.msra.mxu0 0
        %1764 = vmatprep.subr.bf16.mxu0 0
        %1765 = vmatpush1.bf16.msra.mxu0 0
        %1766 = vmatprep.subr.bf16.mxu0 0
        %1767 = vmatpush1.bf16.msra.mxu0 0
        %1768 = vmatprep.subr.bf16.mxu0 0
        %1769 = vmatpush1.bf16.msra.mxu0 0
        %1770 = vmatprep.subr.bf16.mxu0 0
        %1771 = vmatpush1.bf16.msra.mxu0 0
        %1772 = vmatprep.subr.bf16.mxu0 0
        %1773 = vmatpush1.bf16.msra.mxu0 0
        %1774 = vmatprep.subr.bf16.mxu0 0
        %1775 = vmatpush1.bf16.msra.mxu0 0
        %1776 = vmatprep.mubr.bf16.mxu0 0
        %1777 = vmatmul.mubr.bf16.gmra.mrb[0].mxu0 %v1742
        %v1778 = vpop.f32.mrb[0].mxu0
        %v1779 = vadd.f32 %v1727, %v1778
        %v1780 = vpop.f32.mrb[0].mxu0
        %v1781 = vpop.f32.mrb[0].mxu0
        %v1782 = vpop.f32.mrb[0].mxu0
        %1783 = vdwg.mxu0
        %v1784 = vmul.f32 %v1779, 0.5
        %v1785 = vmul.f32 %v1779, 0.044715
        %v1786 = vmul.f32 %v1785, %v1779
        %v1787 = vmul.f32 %v1786, %v1779
        %v1788 = vadd.f32 %v1779, %v1787
        %v1789 = vmul.f32 %v1788, 0.7978846
        %v1790 = vtanh.pop %v1789
        %v1791 = vadd.f32 %v1790, 1.0
        %v1792 = vmul.f32 %v1784, %v1791
        %v1793 = vpack.c.bf16 %v1792, %v1792
        %v1794 = vld [vmem:[%s23] sm:$0xf]
        %v1795 = vld [vmem:[%s23 + $0x4] sm:$0xf]
        %v1796 = vld [vmem:[%s23 + $0x8] sm:$0xf]
        %v1797 = vld [vmem:[%s23 + $0xc] sm:$0xf]
        %v1798 = vld [vmem:[%s23 + $0x10] sm:$0xf]
        %v1799 = vld [vmem:[%s23 + $0x14] sm:$0xf]
        %v1800 = vld [vmem:[%s23 + $0x18] sm:$0xf]
        %v1801 = vld [vmem:[%s23 + $0x1c] sm:$0xf]
        %v1802 = vld [vmem:[%s23 + $0x20] sm:$0xf]
        %v1803 = vld [vmem:[%s23 + $0x24] sm:$0xf]
        %v1804 = vld [vmem:[%s23 + $0x28] sm:$0xf]
        %v1805 = vld [vmem:[%s23 + $0x2c] sm:$0xf]
        %v1806 = vld [vmem:[%s23 + $0x30] sm:$0xf]
        %v1807 = vld [vmem:[%s23 + $0x34] sm:$0xf]
        %v1808 = vld [vmem:[%s23 + $0x38] sm:$0xf]
        %v1809 = vld [vmem:[%s23 + $0x3c] sm:$0xf]
        %v1810 = vld [vmem:[%s24] sm:$0x1]
        %v1812 = vlaneseq
        %v1813 = vshrl.u32 %v1812, 7
        %v1814 = vsub.s32 0, %v1813
        %v1815 = vrot.slane %v1810, %v1814
        %v1833 = vunpack.c.l.b16 %v1794
        %v1834 = vunpack.c.l.b16 %v1795
        %v1835 = vunpack.c.l.b16 %v1796
        %v1836 = vunpack.c.l.b16 %v1797
        %v1837 = vunpack.c.l.b16 %v1798
        %v1838 = vunpack.c.l.b16 %v1799
        %v1839 = vunpack.c.l.b16 %v1800
        %v1840 = vunpack.c.l.b16 %v1801
        %v1841 = vunpack.c.l.b16 %v1802
        %v1842 = vunpack.c.l.b16 %v1803
        %v1843 = vunpack.c.l.b16 %v1804
        %v1844 = vunpack.c.l.b16 %v1805
        %v1845 = vunpack.c.l.b16 %v1806
        %v1846 = vunpack.c.l.b16 %v1807
        %v1847 = vunpack.c.l.b16 %v1808
        %v1848 = vunpack.c.l.b16 %v1809
        %v1849 = vpack.c.b16 %v1834, %v1833
        %v1850 = vpack.c.b16 %v1836, %v1835
        %v1851 = vpack.c.b16 %v1838, %v1837
        %v1852 = vpack.c.b16 %v1840, %v1839
        %v1853 = vpack.c.b16 %v1842, %v1841
        %v1854 = vpack.c.b16 %v1844, %v1843
        %v1855 = vpack.c.b16 %v1846, %v1845
        %v1856 = vpack.c.b16 %v1848, %v1847
        %1865 = vmatprep.subr.bf16.mxu0 0
        %1866 = vmatpush1.bf16.msra.mxu0 %v1849
        %1867 = vmatprep.subr.bf16.mxu0 0
        %1868 = vmatpush1.bf16.msra.mxu0 %v1850
        %1869 = vmatprep.subr.bf16.mxu0 0
        %1870 = vmatpush1.bf16.msra.mxu0 %v1851
        %1871 = vmatprep.subr.bf16.mxu0 0
        %1872 = vmatpush1.bf16.msra.mxu0 %v1852
        %1873 = vmatprep.subr.bf16.mxu0 0
        %1874 = vmatpush1.bf16.msra.mxu0 %v1853
        %1875 = vmatprep.subr.bf16.mxu0 0
        %1876 = vmatpush1.bf16.msra.mxu0 %v1854
        %1877 = vmatprep.subr.bf16.mxu0 0
        %1878 = vmatpush1.bf16.msra.mxu0 %v1855
        %1879 = vmatprep.subr.bf16.mxu0 0
        %1880 = vmatpush1.bf16.msra.mxu0 %v1856
        %1881 = vmatprep.subr.bf16.mxu0 0
        %1882 = vmatpush1.bf16.msra.mxu0 0
        %1883 = vmatprep.subr.bf16.mxu0 0
        %1884 = vmatpush1.bf16.msra.mxu0 0
        %1885 = vmatprep.subr.bf16.mxu0 0
        %1886 = vmatpush1.bf16.msra.mxu0 0
        %1887 = vmatprep.subr.bf16.mxu0 0
        %1888 = vmatpush1.bf16.msra.mxu0 0
        %1889 = vmatprep.subr.bf16.mxu0 0
        %1890 = vmatpush1.bf16.msra.mxu0 0
        %1891 = vmatprep.subr.bf16.mxu0 0
        %1892 = vmatpush1.bf16.msra.mxu0 0
        %1893 = vmatprep.subr.bf16.mxu0 0
        %1894 = vmatpush1.bf16.msra.mxu0 0
        %1895 = vmatprep.subr.bf16.mxu0 0
        %1896 = vmatpush1.bf16.msra.mxu0 0
        %1897 = vmatprep.mubr.bf16.mxu0 0
        %1898 = vmatmul.mubr.bf16.gmra.mrb[0].mxu0 %v1793
        %v1899 = vpop.f32.mrb[0].mxu0
        %v1900 = vadd.f32 %v1815, %v1899
        %v1901 = vpop.f32.mrb[0].mxu0
        %v1902 = vpop.f32.mrb[0].mxu0
        %v1903 = vpop.f32.mrb[0].mxu0
        %1904 = vdwg.mxu0
        %v1906 = vlaneseq
        %v1907 = vshrl.u32 %v1906, 7
        %v1908 = vsub.s32 0, %v1907
        %v1909 = vrot.slane %v1033, %v1908
        %v1911 = vmul.f32 %v1909, %v1900
        %v1912 = vadd.f32 %v1672, %v1911
        %1913 = vst.msk [vmem:[%s1013] sm:$0xff] %vm1036, %v1912
        %s1914 = sand.u32 %s641, 1
        %s1915 = scalar_lea.sflag [#allocation4], %s1914
        %s1916 = sand.u32 %s641, 1
        %s1917 = smul.addr %s1916, 8
        %s1918 = scalar_lea.vmem [#allocation16], %s1917
        // Predicated region
        $region153: #{tpu_custom_call.1} parent=119 // pred_check
          %p1919 = pneg %p651
        $region154: #{tpu_custom_call.1} parent=119 // pred_check_branch
          %1921 = sbr.rel (%p1919) target = $region156
        $region155: #{tpu_custom_call.1} parent=119 // pred_region
          %s1923 = ssub.s32 128, 128
          %1924 = vsyncadd %s1915, %s1923
          %s1925 = sadd.s32 %s57, %s56
          %s1926 = smul.addr %s1925, 128
          %s1927 = scalar_lea.hbm %s25, %s1926
          %s1929 = sshll.u32 %s1918, 4
          %s1930 = int_to_ptr.vmem [resolvable:$true] %s1929
          %1932 = dma.vmem_to_hbm [thread:$0]  %s1930, 128, %s1927, %s1915
        $region156: #{tpu_custom_call.1} parent=119 // pred_fallthru
          _
      $region120: #{tpu_custom_call.1} parent=5 // pred_fallthru
        _
      %p1933 = scmp.le.s32.totalorder 2, %s47
      // Predicated region
      $region157: #{tpu_custom_call.1} parent=5 // pred_check
        %p1934 = pneg %p1933
      $region158: #{tpu_custom_call.1} parent=5 // pred_check_branch
        %1936 = sbr.rel (%p1934) target = $region160
      $region159: #{tpu_custom_call.1} parent=5 // pred_region
        %s1937 = ssub.s32 %s47, 2
        // Predicated region
        $region161: #{tpu_custom_call.1} parent=159 // pred_check
          %p1938 = pneg %p657
        $region162: #{tpu_custom_call.1} parent=159 // pred_check_branch
          %1940 = sbr.rel (%p1938) target = $region164
        $region163: #{tpu_custom_call.1} parent=159 // pred_region
          %s1941 = sand.u32 %s642, 1
          %s1942 = scalar_lea.sflag [#allocation4], %s1941
          %s1943 = sand.u32 %s642, 1
          %s1944 = smul.addr %s1943, 8
          %s1945 = scalar_lea.vmem [#allocation16], %s1944
          %1946 = dma.done %s1942, 128
        $region164: #{tpu_custom_call.1} parent=159 // pred_fallthru
          _
      $region160: #{tpu_custom_call.1} parent=5 // pred_fallthru
        _
    $region6: #{tpu_custom_call.1} parent=1 // loop_footer
      %s51 = sadd.s32 1, %s47
    $region7: #{tpu_custom_call.1} parent=1 // loop_footer_branch
      %46 = sbr.rel target = $region3
    $region8: #{tpu_custom_call.1} parent=1 // loop_exit
      _
    %1947 = vsyncpa [#allocation3], 1
    %s1948 = scalar_lea.sflag [#allocation3], 1
    %1949 = vsyncpa %s1948, 1
    %1950 = vsyncpa [#allocation6], 1
    %s1951 = scalar_lea.sflag [#allocation6], 1
    %1952 = vsyncpa %s1951, 1
    %1953 = vsyncpa [#allocation9], 1
    %s1954 = scalar_lea.sflag [#allocation9], 1
    %1955 = vsyncpa %s1954, 1
    %1956 = vsyncpa [#allocation12], 1
    %s1957 = scalar_lea.sflag [#allocation12], 1
    %1958 = vsyncpa %s1957, 1
    %1959 = vsyncpa [#allocation15], 1
    %1960 = vsyncpa [#allocation4], 1
    %s1961 = scalar_lea.sflag [#allocation4], 1
    %1962 = vsyncpa %s1961, 1

</llo_original>
